<compile_context>
chip_gen: v7x
topology: tpu7x:2x2x1
jax: 0.10.0
libtpu: 0.0.40
codegen_flags: <defaults>
</compile_context>

<pallas_src>
import math
import functools

import jax
import jax.numpy as jnp
from jax import lax
from jax.experimental import pallas as pl
from jax.experimental.pallas import tpu as pltpu


# ----------------------------------------------------------------------------
# Fused encoder-block kernel (one grid step == one batch element)
# ----------------------------------------------------------------------------
def _layernorm(x, gamma, beta):
    # x: (S, D) f32; gamma/beta: (1, D) f32. eps matches torch default (1e-5).
    mean = jnp.mean(x, axis=-1, keepdims=True)
    var = jnp.mean((x - mean) ** 2, axis=-1, keepdims=True)
    return (x - mean) * lax.rsqrt(var + 1e-5) * gamma + beta


def _encoder_block_kernel(vl_ref,                      # scalar-prefetch (SMEM)
                          x_ref, wqkv_ref, bqkv_ref,   # inputs (VMEM)
                          wo_ref, bo_ref,
                          w1_ref, b1_ref, w2_ref, b2_ref,
                          ln_ref,
                          o_ref,                       # output (VMEM)
                          *, num_heads):
    b = pl.program_id(0)
    vl = vl_ref[b]

    x = x_ref[0]                                   # (S, D) bf16
    S, D = x.shape
    Dh = D // num_heads
    xf = x.astype(jnp.float32)

    # ---- fused QKV projection: one (S,D)@(D,3D) bf16 MXU matmul, f32 acc ----
    # (1/sqrt(Dh) is pre-folded into the Q columns of wqkv.)
    qkv_f32 = jnp.dot(x, wqkv_ref[...], preferred_element_type=jnp.float32)
    qkv_f32 = qkv_f32 + bqkv_ref[...].astype(jnp.float32)       # (S, 3D) f32
    qkv = qkv_f32.astype(x.dtype)                  # bf16 operands for the MXU
    q = qkv[:, :D]
    k = qkv[:, D:2 * D]
    v = qkv[:, 2 * D:]

    # ---- additive key mask: (1, S) bias instead of (S, S) boolean select ----
    key_idx = lax.broadcasted_iota(jnp.int32, (1, S), 1)
    key_bias = jnp.where(key_idx < vl, 0.0, -1e9).astype(jnp.float32)

    # ---- masked multi-head attention -----------------------------------------
    # Per-head output projection is accumulated straight into a single
    # lane-dense (S, D) f32 buffer pre-loaded with residual + out-proj bias,
    # so no Dh-wide, lane-misaligned concat is ever materialized.
    ln = ln_ref[...].astype(jnp.float32)           # (4, D)
    y_pre = xf + bo_ref[...].astype(jnp.float32)   # residual + Wo bias
    # TODO(synk): for large H and very long S, switch this static unroll to a
    # lax.fori_loop carrying y_pre to bound live ranges of the (S,S) scores.
    for h in range(num_heads):                     # static unroll over heads
        qh = q[:, h * Dh:(h + 1) * Dh]             # bf16 (S, Dh)
        kh = k[:, h * Dh:(h + 1) * Dh]
        vh = v[:, h * Dh:(h + 1) * Dh]
        # q @ k^T in NT form (no explicit K transpose), native bf16 MXU pass.
        s = lax.dot_general(qh, kh, (((1,), (1,)), ((), ())),
                            preferred_element_type=jnp.float32)  # (S, S) f32
        s = s + key_bias
        m = jnp.max(s, axis=-1, keepdims=True)
        p = jnp.exp(s - m)
        denom = jnp.maximum(jnp.sum(p, axis=-1, keepdims=True),
                            jnp.float32(1e-30))    # valid_len==0 safe
        p = p * pl.reciprocal(denom, approx=True)                 # EUP vrcp
        head = jnp.dot(p.astype(x.dtype), vh,
                       preferred_element_type=jnp.float32)        # (S, Dh)
        # Sublane-aligned row slice of Wo; matmul output stays N=D lane-dense.
        y_pre = y_pre + jnp.dot(head.astype(x.dtype),
                                wo_ref[h * Dh:(h + 1) * Dh, :],
                                preferred_element_type=jnp.float32)

    # ---- add & LayerNorm (fused epilogue) ------------------------------------
    y = _layernorm(y_pre, ln[0:1, :], ln[1:2, :])

    # ---- position-wise FFN + residual + LayerNorm ----------------------------
    yb = y.astype(x.dtype)
    h1 = jnp.dot(yb, w1_ref[...], preferred_element_type=jnp.float32)
    h1 = jnp.maximum(h1 + b1_ref[...].astype(jnp.float32), 0.0)   # ReLU
    h2 = jnp.dot(h1.astype(x.dtype), w2_ref[...],
                 preferred_element_type=jnp.float32)
    h2 = h2 + b2_ref[...].astype(jnp.float32)
    z = _layernorm(h2 + y, ln[2:3, :], ln[3:4, :])

    o_ref[0] = z.astype(o_ref.dtype)


def _vmem_limit_bytes(S, D, F):
    """Shape-derived VMEM request, capped by this generation's physical VMEM."""
    # Single-buffered resident bf16 weights + f32 biases / LN rows.
    weights = 2 * (D * 3 * D + D * D + 2 * D * F) + 4 * (9 * D + F)
    # Double-buffered per-batch activation blocks (in + out, bf16).
    io = 2 * 2 * S * D * 2
    # Dominant live intermediates: qkv (f32+bf16), a few (S,S) f32 score
    # buffers, (S,D) f32 accumulator/LN temps, (S,F) f32 FFN hidden.
    interm = S * 3 * D * 6 + 3 * S * S * 4 + 4 * S * D * 4 + S * F * 4
    limit = int((weights + io + interm) * 1.5) + (8 << 20)   # Mosaic headroom
    try:
        cap = int(pltpu.get_tpu_info().vmem_capacity_bytes * 0.6)
    except Exception:  # pragma: no cover - conservative fallback
        cap = 40 << 20
    return max(16 << 20, min(limit, cap))


def encoder_block(x, p, valid_lens, num_heads, vmem_limit):
    """x: (B, S, D) bf16; params p per layer; valid_lens: (B,) int32."""
    B, S, D = x.shape
    F = p["w1"].shape[1]
    vl = valid_lens.astype(jnp.int32)

    def resident(shape):
        # Weights/biases/LN: constant index_map across the grid -> one VMEM
        # copy (no double buffering), DMA'd once per layer.
        return pl.BlockSpec(shape, lambda b, vl: (0,) * len(shape),
                            pipeline_mode=pl.Buffered(1))

    grid_spec = pltpu.PrefetchScalarGridSpec(
        num_scalar_prefetch=1,
        grid=(B,),
        in_specs=[
            pl.BlockSpec((1, S, D), lambda b, vl: (b, 0, 0)),   # x (per batch)
            resident((D, 3 * D)),                               # Wqkv
            resident((1, 3 * D)),                               # bqkv
            resident((D, D)),                                   # Wo
            resident((1, D)),                                   # bo
            resident((D, F)),                                   # W1
            resident((1, F)),                                   # b1
            resident((F, D)),                                   # W2
            resident((1, D)),                                   # b2
            resident((4, D)),                                   # LN g1,b1,g2,b2
        ],
        out_specs=pl.BlockSpec((1, S, D), lambda b, vl: (b, 0, 0)),
    )

    # Advisory cost hint so XLA can overlap next-layer weight DMA with compute.
    flops = (8 * B * S * D * D) + (4 * B * S * S * D) + (4 * B * S * D * F)
    cost = pl.CostEstimate(
        flops=int(flops),
        transcendentals=int(B * num_heads * S * S),
        bytes_accessed=int(2 * B * S * D * 2
                           + (D * 3 * D + D * D + 2 * D * F) * 2
                           + (9 * D + F) * 4),
    )

    return pl.pallas_call(
        functools.partial(_encoder_block_kernel, num_heads=num_heads),
        out_shape=jax.ShapeDtypeStruct((B, S, D), x.dtype),
        grid_spec=grid_spec,
        compiler_params=pltpu.CompilerParams(
            dimension_semantics=("parallel",),      # shard batches across TCs
            vmem_limit_bytes=vmem_limit),
        cost_estimate=cost,
    )(vl, x, p["wqkv"], p["bqkv"], p["wo"], p["bo"],
      p["w1"], p["b1"], p["w2"], p["b2"], p["ln"])


# ----------------------------------------------------------------------------
# Model assembly
# ----------------------------------------------------------------------------
@functools.partial(jax.jit, static_argnames=("num_heads",))
def bert_model_forward(params, X, segments, valid_lens, *, num_heads):
    """Matches BertModel.forward: x = emb(X, valid_lens); out = bert(x, None, valid_lens).
    `segments` is accepted but unused, exactly as in the reference forward."""
    del segments  # not used by the reference forward
    B, S = X.shape
    D = params["tok_emb"].shape[1]
    F = params["blocks"][0]["w1"].shape[1]
    # Embedding: token gather + positional add (plain JAX gather), cast to bf16.
    x = params["tok_emb"][X] + params["pos_emb"][:S][None, :, :]
    x = x.astype(jnp.bfloat16)
    vmem_limit = _vmem_limit_bytes(S, D, F)
    for blk in params["blocks"]:
        x = encoder_block(x, blk, valid_lens, num_heads, vmem_limit)
    return x.astype(jnp.float32)


def init_params(key, vocab_size, hidden, ffn_hidden, num_layers, max_len,
                num_heads):
    scale = 0.02
    inv_sqrt_dh = 1.0 / math.sqrt(hidden // num_heads)
    keys = jax.random.split(key, 2 + num_layers)
    params = {
        "tok_emb": scale * jax.random.normal(keys[0], (vocab_size, hidden), jnp.float32),
        "pos_emb": scale * jax.random.normal(keys[1], (max_len, hidden), jnp.float32),
        "blocks": [],
    }
    for l in range(num_layers):
        ks = jax.random.split(keys[2 + l], 6)
        # Fold the attention 1/sqrt(Dh) scale into the Q projection (weight and
        # bias) so the kernel never multiplies by it.
        wq = (scale * jax.random.normal(ks[0], (hidden, hidden), jnp.float32)) * inv_sqrt_dh
        wk = scale * jax.random.normal(ks[1], (hidden, hidden), jnp.float32)
        wv = scale * jax.random.normal(ks[2], (hidden, hidden), jnp.float32)
        bq = jnp.zeros((hidden,), jnp.float32) * inv_sqrt_dh   # zero init; keep scale rule explicit
        bk = jnp.zeros((hidden,), jnp.float32)
        bv = jnp.zeros((hidden,), jnp.float32)
        blk = {
            # fused QKV weight [D, 3D], bf16 for the MXU (f32 accumulation in-kernel)
            "wqkv": jnp.concatenate([wq, wk, wv], axis=1).astype(jnp.bfloat16),
            "bqkv": jnp.concatenate([bq, bk, bv])[None, :],
            "wo": (scale * jax.random.normal(ks[3], (hidden, hidden), jnp.float32)
                   ).astype(jnp.bfloat16),
            "bo": jnp.zeros((1, hidden), jnp.float32),
            "w1": (scale * jax.random.normal(ks[4], (hidden, ffn_hidden), jnp.float32)
                   ).astype(jnp.bfloat16),
            "b1": jnp.zeros((1, ffn_hidden), jnp.float32),
            "w2": (scale * jax.random.normal(ks[5], (ffn_hidden, hidden), jnp.float32)
                   ).astype(jnp.bfloat16),
            "b2": jnp.zeros((1, hidden), jnp.float32),
            # rows: [ln1_gamma, ln1_beta, ln2_gamma, ln2_beta]
            "ln": jnp.stack([jnp.ones((hidden,), jnp.float32),
                             jnp.zeros((hidden,), jnp.float32),
                             jnp.ones((hidden,), jnp.float32),
                             jnp.zeros((hidden,), jnp.float32)], axis=0),
        }
        params["blocks"].append(blk)
    return params


if __name__ == "__main__":
    # Small shapes consistent with the module's forward.
    B, S, D, H = 2, 8, 32, 4
    FFN, VOCAB, LAYERS, MAXLEN = 64, 50, 2, 64

    key = jax.random.PRNGKey(0)
    kx, kseg, _ = jax.random.split(key, 3)

    X = jax.random.randint(kx, (B, S), 0, VOCAB, dtype=jnp.int32)
    segments = jax.random.randint(kseg, (B, S), 0, 2, dtype=jnp.int32)  # unused by forward
    valid_lens = jnp.array([8, 5], dtype=jnp.int32)

    params = init_params(jax.random.PRNGKey(42), VOCAB, D, FFN, LAYERS, MAXLEN, H)

    out = bert_model_forward(params, X, segments, valid_lens, num_heads=H)
    out = jax.block_until_ready(out)

    assert out.shape == (B, S, D)
    assert bool(jnp.all(jnp.isfinite(out)))
    # TODO(synk): `self.cls` (masked-LM / NSP head) is constructed in __init__ but never
    # invoked in the reference forward, so it is intentionally not implemented here.
    print("KERNEL_OK")
</pallas_src>

<mosaic_0001>
module attributes {stable_mosaic.version = 11 : i64} {
  func.func @_encoder_block_kernel(%arg0: i32, %arg1: memref<2xi32, #tpu.memory_space<smem>>, %arg2: memref<1x8x32xbf16, #tpu.memory_space<vmem>>, %arg3: memref<32x96xbf16, #tpu.memory_space<vmem>>, %arg4: memref<1x96xf32, #tpu.memory_space<vmem>>, %arg5: memref<32x32xbf16, #tpu.memory_space<vmem>>, %arg6: memref<1x32xf32, #tpu.memory_space<vmem>>, %arg7: memref<32x64xbf16, #tpu.memory_space<vmem>>, %arg8: memref<1x64xf32, #tpu.memory_space<vmem>>, %arg9: memref<64x32xbf16, #tpu.memory_space<vmem>>, %arg10: memref<1x32xf32, #tpu.memory_space<vmem>>, %arg11: memref<4x32xf32, #tpu.memory_space<vmem>>, %arg12: memref<1x8x32xbf16, #tpu.memory_space<vmem>>) attributes {dimension_semantics = [#tpu.dimension_semantics<parallel>], iteration_bounds = array<i64: 2>, scalar_prefetch = 1 : i64, scratch_operands = 0 : i64, tpu.core_type = #tpu.core_type<tc>, window_params = [{transform_indices = @transform_0, window_bounds = array<i64: 1, 8, 32>}, {pipeline_mode = #tpu.pipeline_mode<synchronous>, transform_indices = @transform_1, window_bounds = array<i64: 32, 96>}, {pipeline_mode = #tpu.pipeline_mode<synchronous>, transform_indices = @transform_2, window_bounds = array<i64: 1, 96>}, {pipeline_mode = #tpu.pipeline_mode<synchronous>, transform_indices = @transform_3, window_bounds = array<i64: 32, 32>}, {pipeline_mode = #tpu.pipeline_mode<synchronous>, transform_indices = @transform_4, window_bounds = array<i64: 1, 32>}, {pipeline_mode = #tpu.pipeline_mode<synchronous>, transform_indices = @transform_5, window_bounds = array<i64: 32, 64>}, {pipeline_mode = #tpu.pipeline_mode<synchronous>, transform_indices = @transform_6, window_bounds = array<i64: 1, 64>}, {pipeline_mode = #tpu.pipeline_mode<synchronous>, transform_indices = @transform_7, window_bounds = array<i64: 64, 32>}, {pipeline_mode = #tpu.pipeline_mode<synchronous>, transform_indices = @transform_8, window_bounds = array<i64: 1, 32>}, {pipeline_mode = #tpu.pipeline_mode<synchronous>, transform_indices = @transform_9, window_bounds = array<i64: 4, 32>}, {transform_indices = @transform_10, window_bounds = array<i64: 1, 8, 32>}]} {
    %0 = arith.index_cast %arg0 : i32 to index
    %1 = memref.load %arg1[%0] : memref<2xi32, #tpu.memory_space<smem>>
    %c0 = arith.constant 0 : index
    %c0_0 = arith.constant 0 : index
    %c0_1 = arith.constant 0 : index
    %2 = vector.load %arg2[%c0, %c0_0, %c0_1] : memref<1x8x32xbf16, #tpu.memory_space<vmem>>, vector<1x8x32xbf16>
    %3 = vector.shape_cast %2 : vector<1x8x32xbf16> to vector<8x32xbf16>
    %4 = arith.extf %3 : vector<8x32xbf16> to vector<8x32xf32>
    %c0_2 = arith.constant 0 : index
    %c0_3 = arith.constant 0 : index
    %5 = vector.load %arg3[%c0_2, %c0_3] : memref<32x96xbf16, #tpu.memory_space<vmem>>, vector<32x96xbf16>
    %cst = arith.constant dense<0.000000e+00> : vector<8x96xf32>
    %6 = tpu.matmul %3, %5, %cst {dimension_numbers = #tpu.dot_dimension_numbers<[1], [0], [0], [1], [0, 0, 1, 1], [], []>} : vector<8x32xbf16>, vector<32x96xbf16>, vector<8x96xf32> -> vector<8x96xf32>
    %c0_4 = arith.constant 0 : index
    %c0_5 = arith.constant 0 : index
    %7 = vector.load %arg4[%c0_4, %c0_5] : memref<1x96xf32, #tpu.memory_space<vmem>>, vector<1x96xf32>
    %8 = vector.broadcast %7 : vector<1x96xf32> to vector<8x96xf32>
    %9 = arith.addf %6, %8 : vector<8x96xf32>
    %10 = arith.truncf %9 : vector<8x96xf32> to vector<8x96xbf16>
    %11 = vector.extract_strided_slice %10 {offsets = [0, 0], sizes = [8, 32], strides = [1, 1]} : vector<8x96xbf16> to vector<8x32xbf16>
    %12 = vector.extract_strided_slice %10 {offsets = [0, 32], sizes = [8, 32], strides = [1, 1]} : vector<8x96xbf16> to vector<8x32xbf16>
    %13 = vector.extract_strided_slice %10 {offsets = [0, 64], sizes = [8, 32], strides = [1, 1]} : vector<8x96xbf16> to vector<8x32xbf16>
    %14 = tpu.iota {dimensions = array<i32: 1>} : vector<1x8xi32>
    %15 = vector.broadcast %1 : i32 to vector<1x8xi32>
    %16 = arith.cmpi slt, %14, %15 : vector<1x8xi32>
    %cst_6 = arith.constant 0.000000e+00 : f32
    %cst_7 = arith.constant -1.000000e+09 : f32
    %17 = vector.broadcast %cst_6 : f32 to vector<1x8xf32>
    %18 = vector.broadcast %cst_7 : f32 to vector<1x8xf32>
    %19 = arith.select %16, %17, %18 : vector<1x8xi1>, vector<1x8xf32>
    %c0_8 = arith.constant 0 : index
    %c0_9 = arith.constant 0 : index
    %20 = vector.load %arg11[%c0_8, %c0_9] : memref<4x32xf32, #tpu.memory_space<vmem>>, vector<4x32xf32>
    %c0_10 = arith.constant 0 : index
    %c0_11 = arith.constant 0 : index
    %21 = vector.load %arg6[%c0_10, %c0_11] : memref<1x32xf32, #tpu.memory_space<vmem>>, vector<1x32xf32>
    %22 = vector.broadcast %21 : vector<1x32xf32> to vector<8x32xf32>
    %23 = arith.addf %4, %22 : vector<8x32xf32>
    %24 = vector.extract_strided_slice %11 {offsets = [0, 0], sizes = [8, 8], strides = [1, 1]} : vector<8x32xbf16> to vector<8x8xbf16>
    %25 = vector.extract_strided_slice %12 {offsets = [0, 0], sizes = [8, 8], strides = [1, 1]} : vector<8x32xbf16> to vector<8x8xbf16>
    %26 = vector.extract_strided_slice %13 {offsets = [0, 0], sizes = [8, 8], strides = [1, 1]} : vector<8x32xbf16> to vector<8x8xbf16>
    %cst_12 = arith.constant dense<0.000000e+00> : vector<8x8xf32>
    %27 = tpu.matmul %24, %25, %cst_12 {dimension_numbers = #tpu.dot_dimension_numbers<[1], [1], [0], [0], [0, 0, 1, 0], [], []>} : vector<8x8xbf16>, vector<8x8xbf16>, vector<8x8xf32> -> vector<8x8xf32>
    %28 = vector.broadcast %19 : vector<1x8xf32> to vector<8x8xf32>
    %29 = arith.addf %27, %28 : vector<8x8xf32>
    %cst_13 = arith.constant dense<0xFF800000> : vector<8xf32>
    %30 = vector.multi_reduction <maximumf>, %29, %cst_13 [1] : vector<8x8xf32> to vector<8xf32>
    %31 = vector.shape_cast %30 : vector<8xf32> to vector<8x1xf32>
    %32 = vector.broadcast %31 : vector<8x1xf32> to vector<8x8xf32>
    %33 = arith.subf %29, %32 : vector<8x8xf32>
    %34 = math.exp %33 : vector<8x8xf32>
    %cst_14 = arith.constant dense<0.000000e+00> : vector<8xf32>
    %35 = vector.multi_reduction <add>, %34, %cst_14 [1] : vector<8x8xf32> to vector<8xf32>
    %36 = vector.shape_cast %35 : vector<8xf32> to vector<8x1xf32>
    %cst_15 = arith.constant 1.000000e-30 : f32
    %37 = vector.broadcast %cst_15 : f32 to vector<8x1xf32>
    %38 = arith.maximumf %36, %37 : vector<8x1xf32>
    %39 = tpu.reciprocal %38 {approx = true} : vector<8x1xf32> -> vector<8x1xf32>
    %40 = vector.broadcast %39 : vector<8x1xf32> to vector<8x8xf32>
    %41 = arith.mulf %34, %40 : vector<8x8xf32>
    %42 = arith.truncf %41 : vector<8x8xf32> to vector<8x8xbf16>
    %cst_16 = arith.constant dense<0.000000e+00> : vector<8x8xf32>
    %43 = tpu.matmul %42, %26, %cst_16 {dimension_numbers = #tpu.dot_dimension_numbers<[1], [0], [0], [1], [0, 0, 1, 1], [], []>} : vector<8x8xbf16>, vector<8x8xbf16>, vector<8x8xf32> -> vector<8x8xf32>
    %44 = arith.truncf %43 : vector<8x8xf32> to vector<8x8xbf16>
    %c0_17 = arith.constant 0 : index
    %c0_18 = arith.constant 0 : index
    %45 = vector.load %arg5[%c0_17, %c0_18] : memref<32x32xbf16, #tpu.memory_space<vmem>>, vector<8x32xbf16>
    %cst_19 = arith.constant dense<0.000000e+00> : vector<8x32xf32>
    %46 = tpu.matmul %44, %45, %cst_19 {dimension_numbers = #tpu.dot_dimension_numbers<[1], [0], [0], [1], [0, 0, 1, 1], [], []>} : vector<8x8xbf16>, vector<8x32xbf16>, vector<8x32xf32> -> vector<8x32xf32>
    %47 = arith.addf %23, %46 : vector<8x32xf32>
    %48 = vector.extract_strided_slice %11 {offsets = [0, 8], sizes = [8, 8], strides = [1, 1]} : vector<8x32xbf16> to vector<8x8xbf16>
    %49 = vector.extract_strided_slice %12 {offsets = [0, 8], sizes = [8, 8], strides = [1, 1]} : vector<8x32xbf16> to vector<8x8xbf16>
    %50 = vector.extract_strided_slice %13 {offsets = [0, 8], sizes = [8, 8], strides = [1, 1]} : vector<8x32xbf16> to vector<8x8xbf16>
    %cst_20 = arith.constant dense<0.000000e+00> : vector<8x8xf32>
    %51 = tpu.matmul %48, %49, %cst_20 {dimension_numbers = #tpu.dot_dimension_numbers<[1], [1], [0], [0], [0, 0, 1, 0], [], []>} : vector<8x8xbf16>, vector<8x8xbf16>, vector<8x8xf32> -> vector<8x8xf32>
    %52 = vector.broadcast %19 : vector<1x8xf32> to vector<8x8xf32>
    %53 = arith.addf %51, %52 : vector<8x8xf32>
    %cst_21 = arith.constant dense<0xFF800000> : vector<8xf32>
    %54 = vector.multi_reduction <maximumf>, %53, %cst_21 [1] : vector<8x8xf32> to vector<8xf32>
    %55 = vector.shape_cast %54 : vector<8xf32> to vector<8x1xf32>
    %56 = vector.broadcast %55 : vector<8x1xf32> to vector<8x8xf32>
    %57 = arith.subf %53, %56 : vector<8x8xf32>
    %58 = math.exp %57 : vector<8x8xf32>
    %cst_22 = arith.constant dense<0.000000e+00> : vector<8xf32>
    %59 = vector.multi_reduction <add>, %58, %cst_22 [1] : vector<8x8xf32> to vector<8xf32>
    %60 = vector.shape_cast %59 : vector<8xf32> to vector<8x1xf32>
    %cst_23 = arith.constant 1.000000e-30 : f32
    %61 = vector.broadcast %cst_23 : f32 to vector<8x1xf32>
    %62 = arith.maximumf %60, %61 : vector<8x1xf32>
    %63 = tpu.reciprocal %62 {approx = true} : vector<8x1xf32> -> vector<8x1xf32>
    %64 = vector.broadcast %63 : vector<8x1xf32> to vector<8x8xf32>
    %65 = arith.mulf %58, %64 : vector<8x8xf32>
    %66 = arith.truncf %65 : vector<8x8xf32> to vector<8x8xbf16>
    %cst_24 = arith.constant dense<0.000000e+00> : vector<8x8xf32>
    %67 = tpu.matmul %66, %50, %cst_24 {dimension_numbers = #tpu.dot_dimension_numbers<[1], [0], [0], [1], [0, 0, 1, 1], [], []>} : vector<8x8xbf16>, vector<8x8xbf16>, vector<8x8xf32> -> vector<8x8xf32>
    %68 = arith.truncf %67 : vector<8x8xf32> to vector<8x8xbf16>
    %c8 = arith.constant 8 : index
    %c0_25 = arith.constant 0 : index
    %69 = vector.load %arg5[%c8, %c0_25] : memref<32x32xbf16, #tpu.memory_space<vmem>>, vector<8x32xbf16>
    %cst_26 = arith.constant dense<0.000000e+00> : vector<8x32xf32>
    %70 = tpu.matmul %68, %69, %cst_26 {dimension_numbers = #tpu.dot_dimension_numbers<[1], [0], [0], [1], [0, 0, 1, 1], [], []>} : vector<8x8xbf16>, vector<8x32xbf16>, vector<8x32xf32> -> vector<8x32xf32>
    %71 = arith.addf %47, %70 : vector<8x32xf32>
    %72 = vector.extract_strided_slice %11 {offsets = [0, 16], sizes = [8, 8], strides = [1, 1]} : vector<8x32xbf16> to vector<8x8xbf16>
    %73 = vector.extract_strided_slice %12 {offsets = [0, 16], sizes = [8, 8], strides = [1, 1]} : vector<8x32xbf16> to vector<8x8xbf16>
    %74 = vector.extract_strided_slice %13 {offsets = [0, 16], sizes = [8, 8], strides = [1, 1]} : vector<8x32xbf16> to vector<8x8xbf16>
    %cst_27 = arith.constant dense<0.000000e+00> : vector<8x8xf32>
    %75 = tpu.matmul %72, %73, %cst_27 {dimension_numbers = #tpu.dot_dimension_numbers<[1], [1], [0], [0], [0, 0, 1, 0], [], []>} : vector<8x8xbf16>, vector<8x8xbf16>, vector<8x8xf32> -> vector<8x8xf32>
    %76 = vector.broadcast %19 : vector<1x8xf32> to vector<8x8xf32>
    %77 = arith.addf %75, %76 : vector<8x8xf32>
    %cst_28 = arith.constant dense<0xFF800000> : vector<8xf32>
    %78 = vector.multi_reduction <maximumf>, %77, %cst_28 [1] : vector<8x8xf32> to vector<8xf32>
    %79 = vector.shape_cast %78 : vector<8xf32> to vector<8x1xf32>
    %80 = vector.broadcast %79 : vector<8x1xf32> to vector<8x8xf32>
    %81 = arith.subf %77, %80 : vector<8x8xf32>
    %82 = math.exp %81 : vector<8x8xf32>
    %cst_29 = arith.constant dense<0.000000e+00> : vector<8xf32>
    %83 = vector.multi_reduction <add>, %82, %cst_29 [1] : vector<8x8xf32> to vector<8xf32>
    %84 = vector.shape_cast %83 : vector<8xf32> to vector<8x1xf32>
    %cst_30 = arith.constant 1.000000e-30 : f32
    %85 = vector.broadcast %cst_30 : f32 to vector<8x1xf32>
    %86 = arith.maximumf %84, %85 : vector<8x1xf32>
    %87 = tpu.reciprocal %86 {approx = true} : vector<8x1xf32> -> vector<8x1xf32>
    %88 = vector.broadcast %87 : vector<8x1xf32> to vector<8x8xf32>
    %89 = arith.mulf %82, %88 : vector<8x8xf32>
    %90 = arith.truncf %89 : vector<8x8xf32> to vector<8x8xbf16>
    %cst_31 = arith.constant dense<0.000000e+00> : vector<8x8xf32>
    %91 = tpu.matmul %90, %74, %cst_31 {dimension_numbers = #tpu.dot_dimension_numbers<[1], [0], [0], [1], [0, 0, 1, 1], [], []>} : vector<8x8xbf16>, vector<8x8xbf16>, vector<8x8xf32> -> vector<8x8xf32>
    %92 = arith.truncf %91 : vector<8x8xf32> to vector<8x8xbf16>
    %c16 = arith.constant 16 : index
    %c0_32 = arith.constant 0 : index
    %93 = vector.load %arg5[%c16, %c0_32] : memref<32x32xbf16, #tpu.memory_space<vmem>>, vector<8x32xbf16>
    %cst_33 = arith.constant dense<0.000000e+00> : vector<8x32xf32>
    %94 = tpu.matmul %92, %93, %cst_33 {dimension_numbers = #tpu.dot_dimension_numbers<[1], [0], [0], [1], [0, 0, 1, 1], [], []>} : vector<8x8xbf16>, vector<8x32xbf16>, vector<8x32xf32> -> vector<8x32xf32>
    %95 = arith.addf %71, %94 : vector<8x32xf32>
    %96 = vector.extract_strided_slice %11 {offsets = [0, 24], sizes = [8, 8], strides = [1, 1]} : vector<8x32xbf16> to vector<8x8xbf16>
    %97 = vector.extract_strided_slice %12 {offsets = [0, 24], sizes = [8, 8], strides = [1, 1]} : vector<8x32xbf16> to vector<8x8xbf16>
    %98 = vector.extract_strided_slice %13 {offsets = [0, 24], sizes = [8, 8], strides = [1, 1]} : vector<8x32xbf16> to vector<8x8xbf16>
    %cst_34 = arith.constant dense<0.000000e+00> : vector<8x8xf32>
    %99 = tpu.matmul %96, %97, %cst_34 {dimension_numbers = #tpu.dot_dimension_numbers<[1], [1], [0], [0], [0, 0, 1, 0], [], []>} : vector<8x8xbf16>, vector<8x8xbf16>, vector<8x8xf32> -> vector<8x8xf32>
    %100 = vector.broadcast %19 : vector<1x8xf32> to vector<8x8xf32>
    %101 = arith.addf %99, %100 : vector<8x8xf32>
    %cst_35 = arith.constant dense<0xFF800000> : vector<8xf32>
    %102 = vector.multi_reduction <maximumf>, %101, %cst_35 [1] : vector<8x8xf32> to vector<8xf32>
    %103 = vector.shape_cast %102 : vector<8xf32> to vector<8x1xf32>
    %104 = vector.broadcast %103 : vector<8x1xf32> to vector<8x8xf32>
    %105 = arith.subf %101, %104 : vector<8x8xf32>
    %106 = math.exp %105 : vector<8x8xf32>
    %cst_36 = arith.constant dense<0.000000e+00> : vector<8xf32>
    %107 = vector.multi_reduction <add>, %106, %cst_36 [1] : vector<8x8xf32> to vector<8xf32>
    %108 = vector.shape_cast %107 : vector<8xf32> to vector<8x1xf32>
    %cst_37 = arith.constant 1.000000e-30 : f32
    %109 = vector.broadcast %cst_37 : f32 to vector<8x1xf32>
    %110 = arith.maximumf %108, %109 : vector<8x1xf32>
    %111 = tpu.reciprocal %110 {approx = true} : vector<8x1xf32> -> vector<8x1xf32>
    %112 = vector.broadcast %111 : vector<8x1xf32> to vector<8x8xf32>
    %113 = arith.mulf %106, %112 : vector<8x8xf32>
    %114 = arith.truncf %113 : vector<8x8xf32> to vector<8x8xbf16>
    %cst_38 = arith.constant dense<0.000000e+00> : vector<8x8xf32>
    %115 = tpu.matmul %114, %98, %cst_38 {dimension_numbers = #tpu.dot_dimension_numbers<[1], [0], [0], [1], [0, 0, 1, 1], [], []>} : vector<8x8xbf16>, vector<8x8xbf16>, vector<8x8xf32> -> vector<8x8xf32>
    %116 = arith.truncf %115 : vector<8x8xf32> to vector<8x8xbf16>
    %c24 = arith.constant 24 : index
    %c0_39 = arith.constant 0 : index
    %117 = vector.load %arg5[%c24, %c0_39] : memref<32x32xbf16, #tpu.memory_space<vmem>>, vector<8x32xbf16>
    %cst_40 = arith.constant dense<0.000000e+00> : vector<8x32xf32>
    %118 = tpu.matmul %116, %117, %cst_40 {dimension_numbers = #tpu.dot_dimension_numbers<[1], [0], [0], [1], [0, 0, 1, 1], [], []>} : vector<8x8xbf16>, vector<8x32xbf16>, vector<8x32xf32> -> vector<8x32xf32>
    %119 = arith.addf %95, %118 : vector<8x32xf32>
    %120 = vector.extract_strided_slice %20 {offsets = [0, 0], sizes = [1, 32], strides = [1, 1]} : vector<4x32xf32> to vector<1x32xf32>
    %121 = vector.extract_strided_slice %20 {offsets = [1, 0], sizes = [1, 32], strides = [1, 1]} : vector<4x32xf32> to vector<1x32xf32>
    %cst_41 = arith.constant dense<0.000000e+00> : vector<8xf32>
    %122 = vector.multi_reduction <add>, %119, %cst_41 [1] : vector<8x32xf32> to vector<8xf32>
    %123 = vector.shape_cast %122 : vector<8xf32> to vector<8x1xf32>
    %cst_42 = arith.constant 3.200000e+01 : f32
    %124 = vector.broadcast %cst_42 : f32 to vector<8x1xf32>
    %125 = arith.divf %123, %124 : vector<8x1xf32>
    %126 = vector.broadcast %125 : vector<8x1xf32> to vector<8x32xf32>
    %127 = arith.subf %119, %126 : vector<8x32xf32>
    %128 = arith.mulf %127, %127 : vector<8x32xf32>
    %cst_43 = arith.constant dense<0.000000e+00> : vector<8xf32>
    %129 = vector.multi_reduction <add>, %128, %cst_43 [1] : vector<8x32xf32> to vector<8xf32>
    %130 = vector.shape_cast %129 : vector<8xf32> to vector<8x1xf32>
    %cst_44 = arith.constant 3.200000e+01 : f32
    %131 = vector.broadcast %cst_44 : f32 to vector<8x1xf32>
    %132 = arith.divf %130, %131 : vector<8x1xf32>
    %133 = vector.broadcast %125 : vector<8x1xf32> to vector<8x32xf32>
    %134 = arith.subf %119, %133 : vector<8x32xf32>
    %cst_45 = arith.constant 9.99999974E-6 : f32
    %135 = vector.broadcast %cst_45 : f32 to vector<8x1xf32>
    %136 = arith.addf %132, %135 : vector<8x1xf32>
    %137 = math.rsqrt %136 : vector<8x1xf32>
    %138 = vector.broadcast %137 : vector<8x1xf32> to vector<8x32xf32>
    %139 = arith.mulf %134, %138 : vector<8x32xf32>
    %140 = vector.broadcast %120 : vector<1x32xf32> to vector<8x32xf32>
    %141 = arith.mulf %139, %140 : vector<8x32xf32>
    %142 = vector.broadcast %121 : vector<1x32xf32> to vector<8x32xf32>
    %143 = arith.addf %141, %142 : vector<8x32xf32>
    %144 = arith.truncf %143 : vector<8x32xf32> to vector<8x32xbf16>
    %c0_46 = arith.constant 0 : index
    %c0_47 = arith.constant 0 : index
    %145 = vector.load %arg7[%c0_46, %c0_47] : memref<32x64xbf16, #tpu.memory_space<vmem>>, vector<32x64xbf16>
    %cst_48 = arith.constant dense<0.000000e+00> : vector<8x64xf32>
    %146 = tpu.matmul %144, %145, %cst_48 {dimension_numbers = #tpu.dot_dimension_numbers<[1], [0], [0], [1], [0, 0, 1, 1], [], []>} : vector<8x32xbf16>, vector<32x64xbf16>, vector<8x64xf32> -> vector<8x64xf32>
    %c0_49 = arith.constant 0 : index
    %c0_50 = arith.constant 0 : index
    %147 = vector.load %arg8[%c0_49, %c0_50] : memref<1x64xf32, #tpu.memory_space<vmem>>, vector<1x64xf32>
    %148 = vector.broadcast %147 : vector<1x64xf32> to vector<8x64xf32>
    %149 = arith.addf %146, %148 : vector<8x64xf32>
    %cst_51 = arith.constant 0.000000e+00 : f32
    %150 = vector.broadcast %cst_51 : f32 to vector<8x64xf32>
    %151 = arith.maximumf %149, %150 : vector<8x64xf32>
    %152 = arith.truncf %151 : vector<8x64xf32> to vector<8x64xbf16>
    %c0_52 = arith.constant 0 : index
    %c0_53 = arith.constant 0 : index
    %153 = vector.load %arg9[%c0_52, %c0_53] : memref<64x32xbf16, #tpu.memory_space<vmem>>, vector<64x32xbf16>
    %cst_54 = arith.constant dense<0.000000e+00> : vector<8x32xf32>
    %154 = tpu.matmul %152, %153, %cst_54 {dimension_numbers = #tpu.dot_dimension_numbers<[1], [0], [0], [1], [0, 0, 1, 1], [], []>} : vector<8x64xbf16>, vector<64x32xbf16>, vector<8x32xf32> -> vector<8x32xf32>
    %c0_55 = arith.constant 0 : index
    %c0_56 = arith.constant 0 : index
    %155 = vector.load %arg10[%c0_55, %c0_56] : memref<1x32xf32, #tpu.memory_space<vmem>>, vector<1x32xf32>
    %156 = vector.broadcast %155 : vector<1x32xf32> to vector<8x32xf32>
    %157 = arith.addf %154, %156 : vector<8x32xf32>
    %158 = arith.addf %157, %143 : vector<8x32xf32>
    %159 = vector.extract_strided_slice %20 {offsets = [2, 0], sizes = [1, 32], strides = [1, 1]} : vector<4x32xf32> to vector<1x32xf32>
    %160 = vector.extract_strided_slice %20 {offsets = [3, 0], sizes = [1, 32], strides = [1, 1]} : vector<4x32xf32> to vector<1x32xf32>
    %cst_57 = arith.constant dense<0.000000e+00> : vector<8xf32>
    %161 = vector.multi_reduction <add>, %158, %cst_57 [1] : vector<8x32xf32> to vector<8xf32>
    %162 = vector.shape_cast %161 : vector<8xf32> to vector<8x1xf32>
    %cst_58 = arith.constant 3.200000e+01 : f32
    %163 = vector.broadcast %cst_58 : f32 to vector<8x1xf32>
    %164 = arith.divf %162, %163 : vector<8x1xf32>
    %165 = vector.broadcast %164 : vector<8x1xf32> to vector<8x32xf32>
    %166 = arith.subf %158, %165 : vector<8x32xf32>
    %167 = arith.mulf %166, %166 : vector<8x32xf32>
    %cst_59 = arith.constant dense<0.000000e+00> : vector<8xf32>
    %168 = vector.multi_reduction <add>, %167, %cst_59 [1] : vector<8x32xf32> to vector<8xf32>
    %169 = vector.shape_cast %168 : vector<8xf32> to vector<8x1xf32>
    %cst_60 = arith.constant 3.200000e+01 : f32
    %170 = vector.broadcast %cst_60 : f32 to vector<8x1xf32>
    %171 = arith.divf %169, %170 : vector<8x1xf32>
    %172 = vector.broadcast %164 : vector<8x1xf32> to vector<8x32xf32>
    %173 = arith.subf %158, %172 : vector<8x32xf32>
    %cst_61 = arith.constant 9.99999974E-6 : f32
    %174 = vector.broadcast %cst_61 : f32 to vector<8x1xf32>
    %175 = arith.addf %171, %174 : vector<8x1xf32>
    %176 = math.rsqrt %175 : vector<8x1xf32>
    %177 = vector.broadcast %176 : vector<8x1xf32> to vector<8x32xf32>
    %178 = arith.mulf %173, %177 : vector<8x32xf32>
    %179 = vector.broadcast %159 : vector<1x32xf32> to vector<8x32xf32>
    %180 = arith.mulf %178, %179 : vector<8x32xf32>
    %181 = vector.broadcast %160 : vector<1x32xf32> to vector<8x32xf32>
    %182 = arith.addf %180, %181 : vector<8x32xf32>
    %183 = arith.truncf %182 : vector<8x32xf32> to vector<8x32xbf16>
    %c0_62 = arith.constant 0 : index
    %c0_63 = arith.constant 0 : index
    %c0_64 = arith.constant 0 : index
    %184 = vector.load %arg12[%c0_62, %c0_63, %c0_64] : memref<1x8x32xbf16, #tpu.memory_space<vmem>>, vector<1x8x32xbf16>
    %185 = vector.shape_cast %184 : vector<1x8x32xbf16> to vector<8x32xbf16>
    %186 = vector.shape_cast %183 : vector<8x32xbf16> to vector<1x8x32xbf16>
    tpu.vector_store %arg12[%c0_62, %c0_63, %c0_64], %186 {strides = array<i32>} : memref<1x8x32xbf16, #tpu.memory_space<vmem>>, vector<1x8x32xbf16>,
    return
  }
  func.func @transform_0(%arg0: i32, %arg1: memref<2xi32, #tpu.memory_space<smem>>) -> (i32, i32, i32) {
    %c0_i32 = arith.constant 0 : i32
    %c0_i32_0 = arith.constant 0 : i32
    %c0_i32_1 = arith.constant 0 : i32
    return %arg0, %c0_i32, %c0_i32_0 : i32, i32, i32
  }
  func.func @transform_1(%arg0: i32, %arg1: memref<2xi32, #tpu.memory_space<smem>>) -> (i32, i32) {
    %c0_i32 = arith.constant 0 : i32
    %c0_i32_0 = arith.constant 0 : i32
    %c0_i32_1 = arith.constant 0 : i32
    return %c0_i32, %c0_i32_0 : i32, i32
  }
  func.func @transform_2(%arg0: i32, %arg1: memref<2xi32, #tpu.memory_space<smem>>) -> (i32, i32) {
    %c0_i32 = arith.constant 0 : i32
    %c0_i32_0 = arith.constant 0 : i32
    %c0_i32_1 = arith.constant 0 : i32
    return %c0_i32, %c0_i32_0 : i32, i32
  }
  func.func @transform_3(%arg0: i32, %arg1: memref<2xi32, #tpu.memory_space<smem>>) -> (i32, i32) {
    %c0_i32 = arith.constant 0 : i32
    %c0_i32_0 = arith.constant 0 : i32
    %c0_i32_1 = arith.constant 0 : i32
    return %c0_i32, %c0_i32_0 : i32, i32
  }
  func.func @transform_4(%arg0: i32, %arg1: memref<2xi32, #tpu.memory_space<smem>>) -> (i32, i32) {
    %c0_i32 = arith.constant 0 : i32
    %c0_i32_0 = arith.constant 0 : i32
    %c0_i32_1 = arith.constant 0 : i32
    return %c0_i32, %c0_i32_0 : i32, i32
  }
  func.func @transform_5(%arg0: i32, %arg1: memref<2xi32, #tpu.memory_space<smem>>) -> (i32, i32) {
    %c0_i32 = arith.constant 0 : i32
    %c0_i32_0 = arith.constant 0 : i32
    %c0_i32_1 = arith.constant 0 : i32
    return %c0_i32, %c0_i32_0 : i32, i32
  }
  func.func @transform_6(%arg0: i32, %arg1: memref<2xi32, #tpu.memory_space<smem>>) -> (i32, i32) {
    %c0_i32 = arith.constant 0 : i32
    %c0_i32_0 = arith.constant 0 : i32
    %c0_i32_1 = arith.constant 0 : i32
    return %c0_i32, %c0_i32_0 : i32, i32
  }
  func.func @transform_7(%arg0: i32, %arg1: memref<2xi32, #tpu.memory_space<smem>>) -> (i32, i32) {
    %c0_i32 = arith.constant 0 : i32
    %c0_i32_0 = arith.constant 0 : i32
    %c0_i32_1 = arith.constant 0 : i32
    return %c0_i32, %c0_i32_0 : i32, i32
  }
  func.func @transform_8(%arg0: i32, %arg1: memref<2xi32, #tpu.memory_space<smem>>) -> (i32, i32) {
    %c0_i32 = arith.constant 0 : i32
    %c0_i32_0 = arith.constant 0 : i32
    %c0_i32_1 = arith.constant 0 : i32
    return %c0_i32, %c0_i32_0 : i32, i32
  }
  func.func @transform_9(%arg0: i32, %arg1: memref<2xi32, #tpu.memory_space<smem>>) -> (i32, i32) {
    %c0_i32 = arith.constant 0 : i32
    %c0_i32_0 = arith.constant 0 : i32
    %c0_i32_1 = arith.constant 0 : i32
    return %c0_i32, %c0_i32_0 : i32, i32
  }
  func.func @transform_10(%arg0: i32, %arg1: memref<2xi32, #tpu.memory_space<smem>>) -> (i32, i32, i32) {
    %c0_i32 = arith.constant 0 : i32
    %c0_i32_0 = arith.constant 0 : i32
    %c0_i32_1 = arith.constant 0 : i32
    return %arg0, %c0_i32, %c0_i32_0 : i32, i32, i32
  }
}

</mosaic_0001>

<llo_original>
// kernel: bert_model_forward.2
$region0: #{bert_model_forward.2}
  #allocation0 [shape = 'u32[]', space=smem, size = 0x4, offset = 0x4, fixed_abs, tag = 'smem constant byte address 0x4 - core index']
  #allocation1 [shape = 'u32[144,128]{1,0:T(1,128)}', space=vmem, size = 0x12000, scoped, tag = 'internal scratch']
  #allocation2 [shape = 's32[1]{0}', space=sflag, size = 0x4, scoped, tag = 'scoped memory for bert_model_forward.2']
  #allocation3 [shape = 'u8[512]{0}', space=smem, size = 0x200, scoped, tag = 'prefetched SMEM operand 0']
  %s0 = inlined_call_operand.vmem [shape: s32[2], index: 0, kind: input, shape index: {}]
  %s1 = inlined_call_operand.vmem [shape: bf16[2,8,32], index: 1, kind: input, shape index: {}]
  %s2 = inlined_call_operand.vmem [shape: bf16[32,96], index: 2, kind: input, shape index: {}]
  %s3 = inlined_call_operand.vmem [shape: f32[1,96], index: 3, kind: input, shape index: {}]
  %s4 = inlined_call_operand.vmem [shape: bf16[32,32], index: 4, kind: input, shape index: {}]
  %s5 = inlined_call_operand.vmem [shape: f32[1,32], index: 5, kind: input, shape index: {}]
  %s6 = inlined_call_operand.vmem [shape: bf16[32,64], index: 6, kind: input, shape index: {}]
  %s7 = inlined_call_operand.vmem [shape: f32[1,64], index: 7, kind: input, shape index: {}]
  %s8 = inlined_call_operand.vmem [shape: bf16[64,32], index: 8, kind: input, shape index: {}]
  %s9 = inlined_call_operand.vmem [shape: f32[1,32], index: 9, kind: input, shape index: {}]
  %s10 = inlined_call_operand.vmem [shape: f32[4,32], index: 10, kind: input, shape index: {}]
  %s11 = inlined_call_operand.vmem [shape: bf16[2,8,32], index: 11, kind: output, shape index: {}]
  %s12 = sld [smem:[#allocation0]]
  $region73: #{bert_model_forward.2} parent=0
    _
  %s14 = ssub.s32 1, %s12
  %s15 = scalar_select 0, %s14, %s12
  %s16 = sshll.u32 %s0, 4
  %s17 = int_to_ptr.vmem [resolvable:$true] %s16
  %19 = dma.vmem_to_smem %s17, 16, [#allocation3], [#allocation2]
  %20 = dma.done [#allocation2], 16
  %21 = sfence
  loop: start=0, step=1, limit=4
  $region2: #{bert_model_forward.2} parent=0 // loop_pre_header
    _
  $region3: #{bert_model_forward.2} parent=0 // loop_header
    %s23 = sphi 0, %s27
    %p24 = scmp.ge.s32.totalorder %s23, 4
    %s33 = sphi 0, %s35
    %s36 = sphi 0, %s33
    %s37 = sphi 0, %s36
    %s53 = sphi 0, %s37
    %s57 = sphi 0, %s57
    %s59 = sphi 0, %s57
    %s60 = sphi 0, %s59
    %s74 = sphi 0, %s60
    %s78 = sphi 0, %s78
    %s80 = sphi 0, %s78
    %s81 = sphi 0, %s80
    %s95 = sphi 0, %s81
    %s99 = sphi 0, %s99
    %s101 = sphi 0, %s99
    %s102 = sphi 0, %s101
    %s116 = sphi 0, %s102
    %s120 = sphi 0, %s120
    %s122 = sphi 0, %s120
    %s123 = sphi 0, %s122
    %s137 = sphi 0, %s123
    %s141 = sphi 0, %s141
    %s143 = sphi 0, %s141
    %s144 = sphi 0, %s143
    %s158 = sphi 0, %s144
    %s162 = sphi 0, %s162
    %s164 = sphi 0, %s162
    %s165 = sphi 0, %s164
    %s179 = sphi 0, %s165
    %s183 = sphi 0, %s183
    %s185 = sphi 0, %s183
    %s186 = sphi 0, %s185
    %s200 = sphi 0, %s186
    %s204 = sphi 0, %s204
    %s206 = sphi 0, %s204
    %s207 = sphi 0, %s206
    %s221 = sphi 0, %s207
    %s225 = sphi 0, %s225
    %s227 = sphi 0, %s225
    %s228 = sphi 0, %s227
    %s242 = sphi 0, %s228
    %s248 = sphi 0, %s250
    %s251 = sphi 0, %s248
    %s252 = sphi 0, %s251
    %s268 = sphi 0, %s252
  $region4: #{bert_model_forward.2} parent=0 // loop_header_branch
    %26 = sbr.rel (%p24) target = $region8
  $region5: #{bert_model_forward.2} parent=0 // loop_body
    %s28 = ssub.s32 %s23, 1
    %s29 = ssub.s32 %s23, 2
    %s30 = sadd.s32 %s23, 1
    %s31 = ssub.s32 %s23, %s30
    %p32 = scmp.eq.s32.totalorder %s31, 0
    %s34 = sadd.s32 %s33, 1
    %s35 = scalar_select %p32, %s33, %s34
    %p38 = pneg %p32
    %p39 = scmp.eq.s32.totalorder %s23, 1
    %p40 = por %p38, %p39
    %p41 = scmp.ne.s32.totalorder %s33, %s36
    %p42 = scmp.eq.s32.totalorder %s23, 0
    %p43 = por %p41, %p42
    %p44 = scmp.ne.s32.totalorder %s33, %s36
    %p45 = scmp.eq.s32.totalorder %s28, 1
    %p46 = por %p44, %p45
    %p47 = scmp.ne.s32.totalorder %s36, %s37
    %p48 = scmp.eq.s32.totalorder %s28, 0
    %p49 = por %p47, %p48
    %p50 = scmp.ne.s32.totalorder %s36, %s37
    %p51 = scmp.eq.s32.totalorder %s29, 1
    %p52 = por %p50, %p51
    %p54 = scmp.ne.s32.totalorder %s37, %s53
    %p55 = scmp.eq.s32.totalorder %s29, 0
    %p56 = por %p54, %p55
    %s58 = sadd.s32 %s57, 1
    %p61 = scmp.eq.s32.totalorder %s23, 1
    %p62 = scmp.ne.s32.totalorder %s57, %s59
    %p63 = scmp.eq.s32.totalorder %s23, 0
    %p64 = por %p62, %p63
    %p65 = scmp.ne.s32.totalorder %s57, %s59
    %p66 = scmp.eq.s32.totalorder %s28, 1
    %p67 = por %p65, %p66
    %p68 = scmp.ne.s32.totalorder %s59, %s60
    %p69 = scmp.eq.s32.totalorder %s28, 0
    %p70 = por %p68, %p69
    %p71 = scmp.ne.s32.totalorder %s59, %s60
    %p72 = scmp.eq.s32.totalorder %s29, 1
    %p73 = por %p71, %p72
    %p75 = scmp.ne.s32.totalorder %s60, %s74
    %p76 = scmp.eq.s32.totalorder %s29, 0
    %p77 = por %p75, %p76
    %s79 = sadd.s32 %s78, 1
    %p82 = scmp.eq.s32.totalorder %s23, 1
    %p83 = scmp.ne.s32.totalorder %s78, %s80
    %p84 = scmp.eq.s32.totalorder %s23, 0
    %p85 = por %p83, %p84
    %p86 = scmp.ne.s32.totalorder %s78, %s80
    %p87 = scmp.eq.s32.totalorder %s28, 1
    %p88 = por %p86, %p87
    %p89 = scmp.ne.s32.totalorder %s80, %s81
    %p90 = scmp.eq.s32.totalorder %s28, 0
    %p91 = por %p89, %p90
    %p92 = scmp.ne.s32.totalorder %s80, %s81
    %p93 = scmp.eq.s32.totalorder %s29, 1
    %p94 = por %p92, %p93
    %p96 = scmp.ne.s32.totalorder %s81, %s95
    %p97 = scmp.eq.s32.totalorder %s29, 0
    %p98 = por %p96, %p97
    %s100 = sadd.s32 %s99, 1
    %p103 = scmp.eq.s32.totalorder %s23, 1
    %p104 = scmp.ne.s32.totalorder %s99, %s101
    %p105 = scmp.eq.s32.totalorder %s23, 0
    %p106 = por %p104, %p105
    %p107 = scmp.ne.s32.totalorder %s99, %s101
    %p108 = scmp.eq.s32.totalorder %s28, 1
    %p109 = por %p107, %p108
    %p110 = scmp.ne.s32.totalorder %s101, %s102
    %p111 = scmp.eq.s32.totalorder %s28, 0
    %p112 = por %p110, %p111
    %p113 = scmp.ne.s32.totalorder %s101, %s102
    %p114 = scmp.eq.s32.totalorder %s29, 1
    %p115 = por %p113, %p114
    %p117 = scmp.ne.s32.totalorder %s102, %s116
    %p118 = scmp.eq.s32.totalorder %s29, 0
    %p119 = por %p117, %p118
    %s121 = sadd.s32 %s120, 1
    %p124 = scmp.eq.s32.totalorder %s23, 1
    %p125 = scmp.ne.s32.totalorder %s120, %s122
    %p126 = scmp.eq.s32.totalorder %s23, 0
    %p127 = por %p125, %p126
    %p128 = scmp.ne.s32.totalorder %s120, %s122
    %p129 = scmp.eq.s32.totalorder %s28, 1
    %p130 = por %p128, %p129
    %p131 = scmp.ne.s32.totalorder %s122, %s123
    %p132 = scmp.eq.s32.totalorder %s28, 0
    %p133 = por %p131, %p132
    %p134 = scmp.ne.s32.totalorder %s122, %s123
    %p135 = scmp.eq.s32.totalorder %s29, 1
    %p136 = por %p134, %p135
    %p138 = scmp.ne.s32.totalorder %s123, %s137
    %p139 = scmp.eq.s32.totalorder %s29, 0
    %p140 = por %p138, %p139
    %s142 = sadd.s32 %s141, 1
    %p145 = scmp.eq.s32.totalorder %s23, 1
    %p146 = scmp.ne.s32.totalorder %s141, %s143
    %p147 = scmp.eq.s32.totalorder %s23, 0
    %p148 = por %p146, %p147
    %p149 = scmp.ne.s32.totalorder %s141, %s143
    %p150 = scmp.eq.s32.totalorder %s28, 1
    %p151 = por %p149, %p150
    %p152 = scmp.ne.s32.totalorder %s143, %s144
    %p153 = scmp.eq.s32.totalorder %s28, 0
    %p154 = por %p152, %p153
    %p155 = scmp.ne.s32.totalorder %s143, %s144
    %p156 = scmp.eq.s32.totalorder %s29, 1
    %p157 = por %p155, %p156
    %p159 = scmp.ne.s32.totalorder %s144, %s158
    %p160 = scmp.eq.s32.totalorder %s29, 0
    %p161 = por %p159, %p160
    %s163 = sadd.s32 %s162, 1
    %p166 = scmp.eq.s32.totalorder %s23, 1
    %p167 = scmp.ne.s32.totalorder %s162, %s164
    %p168 = scmp.eq.s32.totalorder %s23, 0
    %p169 = por %p167, %p168
    %p170 = scmp.ne.s32.totalorder %s162, %s164
    %p171 = scmp.eq.s32.totalorder %s28, 1
    %p172 = por %p170, %p171
    %p173 = scmp.ne.s32.totalorder %s164, %s165
    %p174 = scmp.eq.s32.totalorder %s28, 0
    %p175 = por %p173, %p174
    %p176 = scmp.ne.s32.totalorder %s164, %s165
    %p177 = scmp.eq.s32.totalorder %s29, 1
    %p178 = por %p176, %p177
    %p180 = scmp.ne.s32.totalorder %s165, %s179
    %p181 = scmp.eq.s32.totalorder %s29, 0
    %p182 = por %p180, %p181
    %s184 = sadd.s32 %s183, 1
    %p187 = scmp.eq.s32.totalorder %s23, 1
    %p188 = scmp.ne.s32.totalorder %s183, %s185
    %p189 = scmp.eq.s32.totalorder %s23, 0
    %p190 = por %p188, %p189
    %p191 = scmp.ne.s32.totalorder %s183, %s185
    %p192 = scmp.eq.s32.totalorder %s28, 1
    %p193 = por %p191, %p192
    %p194 = scmp.ne.s32.totalorder %s185, %s186
    %p195 = scmp.eq.s32.totalorder %s28, 0
    %p196 = por %p194, %p195
    %p197 = scmp.ne.s32.totalorder %s185, %s186
    %p198 = scmp.eq.s32.totalorder %s29, 1
    %p199 = por %p197, %p198
    %p201 = scmp.ne.s32.totalorder %s186, %s200
    %p202 = scmp.eq.s32.totalorder %s29, 0
    %p203 = por %p201, %p202
    %s205 = sadd.s32 %s204, 1
    %p208 = scmp.eq.s32.totalorder %s23, 1
    %p209 = scmp.ne.s32.totalorder %s204, %s206
    %p210 = scmp.eq.s32.totalorder %s23, 0
    %p211 = por %p209, %p210
    %p212 = scmp.ne.s32.totalorder %s204, %s206
    %p213 = scmp.eq.s32.totalorder %s28, 1
    %p214 = por %p212, %p213
    %p215 = scmp.ne.s32.totalorder %s206, %s207
    %p216 = scmp.eq.s32.totalorder %s28, 0
    %p217 = por %p215, %p216
    %p218 = scmp.ne.s32.totalorder %s206, %s207
    %p219 = scmp.eq.s32.totalorder %s29, 1
    %p220 = por %p218, %p219
    %p222 = scmp.ne.s32.totalorder %s207, %s221
    %p223 = scmp.eq.s32.totalorder %s29, 0
    %p224 = por %p222, %p223
    %s226 = sadd.s32 %s225, 1
    %p229 = scmp.eq.s32.totalorder %s23, 1
    %p230 = scmp.ne.s32.totalorder %s225, %s227
    %p231 = scmp.eq.s32.totalorder %s23, 0
    %p232 = por %p230, %p231
    %p233 = scmp.ne.s32.totalorder %s225, %s227
    %p234 = scmp.eq.s32.totalorder %s28, 1
    %p235 = por %p233, %p234
    %p236 = scmp.ne.s32.totalorder %s227, %s228
    %p237 = scmp.eq.s32.totalorder %s28, 0
    %p238 = por %p236, %p237
    %p239 = scmp.ne.s32.totalorder %s227, %s228
    %p240 = scmp.eq.s32.totalorder %s29, 1
    %p241 = por %p239, %p240
    %p243 = scmp.ne.s32.totalorder %s228, %s242
    %p244 = scmp.eq.s32.totalorder %s29, 0
    %p245 = por %p243, %p244
    %s246 = ssub.s32 %s23, %s30
    %p247 = scmp.eq.s32.totalorder %s246, 0
    %s249 = sadd.s32 %s248, 1
    %s250 = scalar_select %p247, %s248, %s249
    %p253 = pneg %p247
    %p254 = scmp.eq.s32.totalorder %s23, 1
    %p255 = por %p253, %p254
    %p256 = scmp.ne.s32.totalorder %s248, %s251
    %p257 = scmp.eq.s32.totalorder %s23, 0
    %p258 = por %p256, %p257
    %p259 = scmp.ne.s32.totalorder %s248, %s251
    %p260 = scmp.eq.s32.totalorder %s28, 1
    %p261 = por %p259, %p260
    %p262 = scmp.ne.s32.totalorder %s251, %s252
    %p263 = scmp.eq.s32.totalorder %s28, 0
    %p264 = por %p262, %p263
    %p265 = scmp.ne.s32.totalorder %s251, %s252
    %p266 = scmp.eq.s32.totalorder %s29, 1
    %p267 = por %p265, %p266
    %p269 = scmp.ne.s32.totalorder %s252, %s268
    %p270 = scmp.eq.s32.totalorder %s29, 0
    %p271 = por %p269, %p270
    %p272 = scmp.le.s32.totalorder 1, %s23
    %p273 = scmp.lt.s32.totalorder %s23, 3
    %p274 = pnand %p272, %p273
    %p275 = pneg %p274
    // Predicated region
    $region9: #{bert_model_forward.2} parent=5 // pred_check
      _
    $region10: #{bert_model_forward.2} parent=5 // pred_check_branch
      %277 = sbr.rel (%p274) target = $region12
    $region11: #{bert_model_forward.2} parent=5 // pred_region
      %s278 = ssub.s32 %s23, 1
      // Predicated region
      $region13: #{bert_model_forward.2} parent=11 // pred_check
        %p279 = pneg %p70
      $region14: #{bert_model_forward.2} parent=11 // pred_check_branch
        %281 = sbr.rel (%p279) target = $region16
      $region15: #{bert_model_forward.2} parent=11 // pred_region
        _
      $region16: #{bert_model_forward.2} parent=11 // pred_fallthru
        _
      // Predicated region
      $region17: #{bert_model_forward.2} parent=11 // pred_check
        %p282 = pneg %p91
      $region18: #{bert_model_forward.2} parent=11 // pred_check_branch
        %284 = sbr.rel (%p282) target = $region20
      $region19: #{bert_model_forward.2} parent=11 // pred_region
        _
      $region20: #{bert_model_forward.2} parent=11 // pred_fallthru
        _
      // Predicated region
      $region21: #{bert_model_forward.2} parent=11 // pred_check
        %p285 = pneg %p112
      $region22: #{bert_model_forward.2} parent=11 // pred_check_branch
        %287 = sbr.rel (%p285) target = $region24
      $region23: #{bert_model_forward.2} parent=11 // pred_region
        _
      $region24: #{bert_model_forward.2} parent=11 // pred_fallthru
        _
      // Predicated region
      $region25: #{bert_model_forward.2} parent=11 // pred_check
        %p288 = pneg %p133
      $region26: #{bert_model_forward.2} parent=11 // pred_check_branch
        %290 = sbr.rel (%p288) target = $region28
      $region27: #{bert_model_forward.2} parent=11 // pred_region
        _
      $region28: #{bert_model_forward.2} parent=11 // pred_fallthru
        _
      // Predicated region
      $region29: #{bert_model_forward.2} parent=11 // pred_check
        %p291 = pneg %p154
      $region30: #{bert_model_forward.2} parent=11 // pred_check_branch
        %293 = sbr.rel (%p291) target = $region32
      $region31: #{bert_model_forward.2} parent=11 // pred_region
        _
      $region32: #{bert_model_forward.2} parent=11 // pred_fallthru
        _
      // Predicated region
      $region33: #{bert_model_forward.2} parent=11 // pred_check
        %p294 = pneg %p175
      $region34: #{bert_model_forward.2} parent=11 // pred_check_branch
        %296 = sbr.rel (%p294) target = $region36
      $region35: #{bert_model_forward.2} parent=11 // pred_region
        _
      $region36: #{bert_model_forward.2} parent=11 // pred_fallthru
        _
      // Predicated region
      $region37: #{bert_model_forward.2} parent=11 // pred_check
        %p297 = pneg %p196
      $region38: #{bert_model_forward.2} parent=11 // pred_check_branch
        %299 = sbr.rel (%p297) target = $region40
      $region39: #{bert_model_forward.2} parent=11 // pred_region
        _
      $region40: #{bert_model_forward.2} parent=11 // pred_fallthru
        _
      // Predicated region
      $region41: #{bert_model_forward.2} parent=11 // pred_check
        %p300 = pneg %p217
      $region42: #{bert_model_forward.2} parent=11 // pred_check_branch
        %302 = sbr.rel (%p300) target = $region44
      $region43: #{bert_model_forward.2} parent=11 // pred_region
        _
      $region44: #{bert_model_forward.2} parent=11 // pred_fallthru
        _
      // Predicated region
      $region45: #{bert_model_forward.2} parent=11 // pred_check
        %p303 = pneg %p238
      $region46: #{bert_model_forward.2} parent=11 // pred_check_branch
        %305 = sbr.rel (%p303) target = $region48
      $region47: #{bert_model_forward.2} parent=11 // pred_region
        _
      $region48: #{bert_model_forward.2} parent=11 // pred_fallthru
        _
    $region12: #{bert_model_forward.2} parent=5 // pred_fallthru
      _
    %p306 = scmp.lt.s32.totalorder %s23, 2
    // Predicated region
    $region49: #{bert_model_forward.2} parent=5 // pred_check
      %p307 = pneg %p306
    $region50: #{bert_model_forward.2} parent=5 // pred_check_branch
      %309 = sbr.rel (%p307) target = $region52
    $region51: #{bert_model_forward.2} parent=5 // pred_region
      // Predicated region
      $region53: #{bert_model_forward.2} parent=51 // pred_check
        %p310 = pneg %p43
      $region54: #{bert_model_forward.2} parent=51 // pred_check_branch
        %312 = sbr.rel (%p310) target = $region56
      $region55: #{bert_model_forward.2} parent=51 // pred_region
        %p313 = scmp.lt.s32.totalorder %s23, 1
        %s314 = scalar_select %p313, %s23, 1
        %s315 = smul.addr %s314, 4
        %s316 = scalar_lea.vmem %s1, %s315
      $region56: #{bert_model_forward.2} parent=51 // pred_fallthru
        _
    $region52: #{bert_model_forward.2} parent=5 // pred_fallthru
      _
    %p317 = scmp.le.s32.totalorder 1, %s23
    %p318 = scmp.lt.s32.totalorder %s23, 3
    %p319 = pnand %p317, %p318
    %p320 = pneg %p319
    // Predicated region
    $region57: #{bert_model_forward.2} parent=5 // pred_check
      _
    $region58: #{bert_model_forward.2} parent=5 // pred_check_branch
      %322 = sbr.rel (%p319) target = $region60
    $region59: #{bert_model_forward.2} parent=5 // pred_region
      %s323 = ssub.s32 %s23, 1
      %p324 = scmp.lt.s32.totalorder %s28, 1
      %s325 = scalar_select %p324, %s28, 1
      %s326 = smul.addr %s325, 4
      %s327 = scalar_lea.vmem %s1, %s326
      %p328 = pneg %p49
      %p329 = pneg %p46
      %p330 = pneg %p70
      %p331 = pneg %p67
      %p332 = pneg %p91
      %p333 = pneg %p88
      %p334 = pneg %p112
      %p335 = pneg %p109
      %p336 = pneg %p133
      %p337 = pneg %p130
      %p338 = pneg %p154
      %p339 = pneg %p151
      %p340 = pneg %p175
      %p341 = pneg %p172
      %p342 = pneg %p196
      %p343 = pneg %p193
      %p344 = pneg %p217
      %p345 = pneg %p214
      %p346 = pneg %p238
      %p347 = pneg %p235
      %p348 = pneg %p264
      %p349 = pneg %p261
      %p350 = scmp.lt.s32.totalorder %s28, 1
      %s351 = scalar_select %p350, %s28, 1
      %s352 = smul.addr %s351, 4
      %s353 = scalar_lea.vmem %s11, %s352
      %p354 = scmp.lt.s32.totalorder %s28, 1
      %s355 = scalar_select %p354, %s28, 1
      %s356 = smul.addr %s355, 4
      %s357 = scalar_lea.vmem %s1, %s356
      %p358 = scmp.lt.s32.totalorder %s28, 1
      %s359 = scalar_select %p358, %s28, 1
      %s360 = smul.addr %s359, 4
      %s361 = scalar_lea.vmem %s11, %s360
      %s363 = sld [smem:[#allocation3 + %s28]]
      %v364 = vld [vmem:[%s357] sm:$0xf]
      %v365 = vunpack.c.l.bf16 %v364
      %v366 = vld [vmem:[%s2] sm:$0xf]
      %v367 = vld [vmem:[%s2 + $0x4] sm:$0xf]
      %v368 = vld [vmem:[%s2 + $0x8] sm:$0xf]
      %v369 = vld [vmem:[%s2 + $0xc] sm:$0xf]
      %v370 = vld [vmem:[%s3] sm:$0x1]
      %v372 = vlaneseq
      %v373 = vshrl.u32 %v372, 7
      %v374 = vsub.s32 0, %v373
      %v375 = vrot.slane %v370, %v374
      %v381 = vunpack.c.l.b16 %v366
      %v382 = vunpack.c.l.b16 %v367
      %v383 = vunpack.c.l.b16 %v368
      %v384 = vunpack.c.l.b16 %v369
      %v385 = vpack.c.b16 %v382, %v381
      %v386 = vpack.c.b16 %v384, %v383
      %vm389 = vcmask 261120
      %v391 = vsel %vm389, %v364, 0
      %393 = vmatprep.subr.bf16.mxu0 0
      %394 = vmatpush1.bf16.msra.mxu0 %v385
      %395 = vmatprep.subr.bf16.mxu0 0
      %396 = vmatpush1.bf16.msra.mxu0 %v386
      %397 = vmatprep.subr.bf16.mxu0 0
      %398 = vmatpush1.bf16.msra.mxu0 0
      %399 = vmatprep.subr.bf16.mxu0 0
      %400 = vmatpush1.bf16.msra.mxu0 0
      %401 = vmatprep.subr.bf16.mxu0 0
      %402 = vmatpush1.bf16.msra.mxu0 0
      %403 = vmatprep.subr.bf16.mxu0 0
      %404 = vmatpush1.bf16.msra.mxu0 0
      %405 = vmatprep.subr.bf16.mxu0 0
      %406 = vmatpush1.bf16.msra.mxu0 0
      %407 = vmatprep.subr.bf16.mxu0 0
      %408 = vmatpush1.bf16.msra.mxu0 0
      %409 = vmatprep.subr.bf16.mxu0 0
      %410 = vmatpush1.bf16.msra.mxu0 0
      %411 = vmatprep.subr.bf16.mxu0 0
      %412 = vmatpush1.bf16.msra.mxu0 0
      %413 = vmatprep.subr.bf16.mxu0 0
      %414 = vmatpush1.bf16.msra.mxu0 0
      %415 = vmatprep.subr.bf16.mxu0 0
      %416 = vmatpush1.bf16.msra.mxu0 0
      %417 = vmatprep.subr.bf16.mxu0 0
      %418 = vmatpush1.bf16.msra.mxu0 0
      %419 = vmatprep.subr.bf16.mxu0 0
      %420 = vmatpush1.bf16.msra.mxu0 0
      %421 = vmatprep.subr.bf16.mxu0 0
      %422 = vmatpush1.bf16.msra.mxu0 0
      %423 = vmatprep.subr.bf16.mxu0 0
      %424 = vmatpush1.bf16.msra.mxu0 0
      %425 = vmatprep.mubr.bf16.mxu0 0
      %426 = vmatmul.mubr.bf16.gmra.mrb[0].mxu0 %v391
      %v427 = vpop.f32.mrb[0].mxu0
      %v428 = vadd.f32 %v375, %v427
      %v429 = vpop.f32.mrb[0].mxu0
      %v430 = vpop.f32.mrb[0].mxu0
      %v431 = vpop.f32.mrb[0].mxu0
      %432 = vdwg.mxu0
      %v433 = vpack.c.bf16 %v428, %v428
      %v434 = vlaneseq
      %v435 = vand.u32 %v434, 127
      %v436 = vstv %s363
      %vm437 = vcmp.lt.s32.totalorder %v435, %v436
      %v438 = vsel %vm437, 0.0, -1e+09
      %v439 = vld [vmem:[%s10] sm:$0xf]
      %v440 = vld [vmem:[%s5] sm:$0x1]
      %v442 = vlaneseq
      %v443 = vshrl.u32 %v442, 7
      %v444 = vsub.s32 0, %v443
      %v445 = vrot.slane %v440, %v444
      %v447 = vadd.f32 %v365, %v445
      %449 = vrot.lane.b32.xlu0 %v433, 96
      %v450 = vpop.permute.xlu0 %449
      %vm451 = vcmask 64512
      %v453 = vsel %vm451, %v433, 0
      %v456 = vsel %vm451, %v450, 0
      %458 = vmatprep.subr.bf16.mxu0 0
      %459 = vmatpush1.bf16.xpose.msra.mxu0 %v456
      %460 = vmatprep.subr.bf16.mxu0 0
      %461 = vmatpush1.bf16.xpose.msra.mxu0 0
      %462 = vmatprep.subr.bf16.mxu0 0
      %463 = vmatpush1.bf16.xpose.msra.mxu0 0
      %464 = vmatprep.subr.bf16.mxu0 0
      %465 = vmatpush1.bf16.xpose.msra.mxu0 0
      %466 = vmatprep.subr.bf16.mxu0 0
      %467 = vmatpush1.bf16.xpose.msra.mxu0 0
      %468 = vmatprep.subr.bf16.mxu0 0
      %469 = vmatpush1.bf16.xpose.msra.mxu0 0
      %470 = vmatprep.subr.bf16.mxu0 0
      %471 = vmatpush1.bf16.xpose.msra.mxu0 0
      %472 = vmatprep.subr.bf16.mxu0 0
      %473 = vmatpush1.bf16.xpose.msra.mxu0 0
      %474 = vmatprep.subr.bf16.mxu0 0
      %475 = vmatpush1.bf16.xpose.msra.mxu0 0
      %476 = vmatprep.subr.bf16.mxu0 0
      %477 = vmatpush1.bf16.xpose.msra.mxu0 0
      %478 = vmatprep.subr.bf16.mxu0 0
      %479 = vmatpush1.bf16.xpose.msra.mxu0 0
      %480 = vmatprep.subr.bf16.mxu0 0
      %481 = vmatpush1.bf16.xpose.msra.mxu0 0
      %482 = vmatprep.subr.bf16.mxu0 0
      %483 = vmatpush1.bf16.xpose.msra.mxu0 0
      %484 = vmatprep.subr.bf16.mxu0 0
      %485 = vmatpush1.bf16.xpose.msra.mxu0 0
      %486 = vmatprep.subr.bf16.mxu0 0
      %487 = vmatpush1.bf16.xpose.msra.mxu0 0
      %488 = vmatprep.subr.bf16.mxu0 0
      %489 = vmatpush1.bf16.xpose.msra.mxu0 0
      %490 = vmatprep.mubr.bf16.mxu0 0
      %491 = vmatmul.mubr.bf16.gmra.mrb[0].mxu0 %v453
      %v492 = vpop.f32.mrb[0].mxu0
      %v493 = vadd.f32 %v438, %v492
      %v494 = vpop.f32.mrb[0].mxu0
      %v495 = vpop.f32.mrb[0].mxu0
      %v496 = vpop.f32.mrb[0].mxu0
      %497 = vdwg.mxu0
      %v498 = vsel %vm451, %v493, -inf
      %499 = vmax.xlane.f32.xlu0 %v498
      %v500 = vpop.xlane.xlu0 %499
      %v501 = vsub.f32 %v493, %v500
      %v502 = vmul.f32 %v501, 1.442695
      %v503 = vpow.pop %v502
      %v504 = vsel %vm451, %v503, 0.0
      %505 = vadd.xlane.f32.xlu0 %v504
      %v506 = vpop.xlane.xlu0 %505
      %v507 = vmax.f32 %v506, 1e-30
      %v508 = vrcp.pop %v507
      %v509 = vmul.f32 %v503, %v508
      %v510 = vpack.c.bf16 %v509, %v509
      %511 = vrot.lane.b32.xlu0 %v433, 64
      %v512 = vpop.permute.xlu0 %511
      %v514 = vsel %vm451, %v510, 0
      %vm516 = vcmask 1043456
      %v518 = vsel %vm516, %v512, 0
      %520 = vmatprep.subr.bf16.mxu0 0
      %521 = vmatpush1.bf16.msra.mxu0 %v518
      %522 = vmatprep.subr.bf16.mxu0 0
      %523 = vmatpush1.bf16.msra.mxu0 0
      %524 = vmatprep.subr.bf16.mxu0 0
      %525 = vmatpush1.bf16.msra.mxu0 0
      %526 = vmatprep.subr.bf16.mxu0 0
      %527 = vmatpush1.bf16.msra.mxu0 0
      %528 = vmatprep.subr.bf16.mxu0 0
      %529 = vmatpush1.bf16.msra.mxu0 0
      %530 = vmatprep.subr.bf16.mxu0 0
      %531 = vmatpush1.bf16.msra.mxu0 0
      %532 = vmatprep.subr.bf16.mxu0 0
      %533 = vmatpush1.bf16.msra.mxu0 0
      %534 = vmatprep.subr.bf16.mxu0 0
      %535 = vmatpush1.bf16.msra.mxu0 0
      %536 = vmatprep.subr.bf16.mxu0 0
      %537 = vmatpush1.bf16.msra.mxu0 0
      %538 = vmatprep.subr.bf16.mxu0 0
      %539 = vmatpush1.bf16.msra.mxu0 0
      %540 = vmatprep.subr.bf16.mxu0 0
      %541 = vmatpush1.bf16.msra.mxu0 0
      %542 = vmatprep.subr.bf16.mxu0 0
      %543 = vmatpush1.bf16.msra.mxu0 0
      %544 = vmatprep.subr.bf16.mxu0 0
      %545 = vmatpush1.bf16.msra.mxu0 0
      %546 = vmatprep.subr.bf16.mxu0 0
      %547 = vmatpush1.bf16.msra.mxu0 0
      %548 = vmatprep.subr.bf16.mxu0 0
      %549 = vmatpush1.bf16.msra.mxu0 0
      %550 = vmatprep.subr.bf16.mxu0 0
      %551 = vmatpush1.bf16.msra.mxu0 0
      %552 = vmatprep.mubr.bf16.mxu0 0
      %553 = vmatmul.mubr.bf16.gmra.mrb[0].mxu0 %v514
      %v554 = vpop.f32.mrb[0].mxu0
      %v555 = vadd.f32 0.0, %v554
      %v556 = vpop.f32.mrb[0].mxu0
      %v557 = vpop.f32.mrb[0].mxu0
      %v558 = vpop.f32.mrb[0].mxu0
      %559 = vdwg.mxu0
      %v560 = vpack.c.bf16 %v555, %v555
      %v561 = vld [vmem:[%s4] sm:$0xf]
      %v563 = vsel %vm451, %v560, 0
      %v566 = vsel %vm516, %v561, 0
      %568 = vmatprep.subr.bf16.mxu0 0
      %569 = vmatpush1.bf16.msra.mxu0 %v566
      %570 = vmatprep.subr.bf16.mxu0 0
      %571 = vmatpush1.bf16.msra.mxu0 0
      %572 = vmatprep.subr.bf16.mxu0 0
      %573 = vmatpush1.bf16.msra.mxu0 0
      %574 = vmatprep.subr.bf16.mxu0 0
      %575 = vmatpush1.bf16.msra.mxu0 0
      %576 = vmatprep.subr.bf16.mxu0 0
      %577 = vmatpush1.bf16.msra.mxu0 0
      %578 = vmatprep.subr.bf16.mxu0 0
      %579 = vmatpush1.bf16.msra.mxu0 0
      %580 = vmatprep.subr.bf16.mxu0 0
      %581 = vmatpush1.bf16.msra.mxu0 0
      %582 = vmatprep.subr.bf16.mxu0 0
      %583 = vmatpush1.bf16.msra.mxu0 0
      %584 = vmatprep.subr.bf16.mxu0 0
      %585 = vmatpush1.bf16.msra.mxu0 0
      %586 = vmatprep.subr.bf16.mxu0 0
      %587 = vmatpush1.bf16.msra.mxu0 0
      %588 = vmatprep.subr.bf16.mxu0 0
      %589 = vmatpush1.bf16.msra.mxu0 0
      %590 = vmatprep.subr.bf16.mxu0 0
      %591 = vmatpush1.bf16.msra.mxu0 0
      %592 = vmatprep.subr.bf16.mxu0 0
      %593 = vmatpush1.bf16.msra.mxu0 0
      %594 = vmatprep.subr.bf16.mxu0 0
      %595 = vmatpush1.bf16.msra.mxu0 0
      %596 = vmatprep.subr.bf16.mxu0 0
      %597 = vmatpush1.bf16.msra.mxu0 0
      %598 = vmatprep.subr.bf16.mxu0 0
      %599 = vmatpush1.bf16.msra.mxu0 0
      %600 = vmatprep.mubr.bf16.mxu0 0
      %601 = vmatmul.mubr.bf16.gmra.mrb[0].mxu0 %v563
      %v602 = vpop.f32.mrb[0].mxu0
      %v603 = vadd.f32 0.0, %v602
      %v604 = vpop.f32.mrb[0].mxu0
      %v605 = vpop.f32.mrb[0].mxu0
      %v606 = vpop.f32.mrb[0].mxu0
      %607 = vdwg.mxu0
      %v608 = vadd.f32 %v447, %v603
      %609 = vrot.lane.b32.xlu0 %v433, 120
      %v610 = vpop.permute.xlu0 %609
      %611 = vrot.lane.b32.xlu0 %v433, 88
      %v612 = vpop.permute.xlu0 %611
      %v614 = vsel %vm451, %v610, 0
      %v617 = vsel %vm451, %v612, 0
      %619 = vmatprep.subr.bf16.mxu0 0
      %620 = vmatpush1.bf16.xpose.msra.mxu0 %v617
      %621 = vmatprep.subr.bf16.mxu0 0
      %622 = vmatpush1.bf16.xpose.msra.mxu0 0
      %623 = vmatprep.subr.bf16.mxu0 0
      %624 = vmatpush1.bf16.xpose.msra.mxu0 0
      %625 = vmatprep.subr.bf16.mxu0 0
      %626 = vmatpush1.bf16.xpose.msra.mxu0 0
      %627 = vmatprep.subr.bf16.mxu0 0
      %628 = vmatpush1.bf16.xpose.msra.mxu0 0
      %629 = vmatprep.subr.bf16.mxu0 0
      %630 = vmatpush1.bf16.xpose.msra.mxu0 0
      %631 = vmatprep.subr.bf16.mxu0 0
      %632 = vmatpush1.bf16.xpose.msra.mxu0 0
      %633 = vmatprep.subr.bf16.mxu0 0
      %634 = vmatpush1.bf16.xpose.msra.mxu0 0
      %635 = vmatprep.subr.bf16.mxu0 0
      %636 = vmatpush1.bf16.xpose.msra.mxu0 0
      %637 = vmatprep.subr.bf16.mxu0 0
      %638 = vmatpush1.bf16.xpose.msra.mxu0 0
      %639 = vmatprep.subr.bf16.mxu0 0
      %640 = vmatpush1.bf16.xpose.msra.mxu0 0
      %641 = vmatprep.subr.bf16.mxu0 0
      %642 = vmatpush1.bf16.xpose.msra.mxu0 0
      %643 = vmatprep.subr.bf16.mxu0 0
      %644 = vmatpush1.bf16.xpose.msra.mxu0 0
      %645 = vmatprep.subr.bf16.mxu0 0
      %646 = vmatpush1.bf16.xpose.msra.mxu0 0
      %647 = vmatprep.subr.bf16.mxu0 0
      %648 = vmatpush1.bf16.xpose.msra.mxu0 0
      %649 = vmatprep.subr.bf16.mxu0 0
      %650 = vmatpush1.bf16.xpose.msra.mxu0 0
      %651 = vmatprep.mubr.bf16.mxu0 0
      %652 = vmatmul.mubr.bf16.gmra.mrb[0].mxu0 %v614
      %v653 = vpop.f32.mrb[0].mxu0
      %v654 = vadd.f32 %v438, %v653
      %v655 = vpop.f32.mrb[0].mxu0
      %v656 = vpop.f32.mrb[0].mxu0
      %v657 = vpop.f32.mrb[0].mxu0
      %658 = vdwg.mxu0
      %v659 = vsel %vm451, %v654, -inf
      %660 = vmax.xlane.f32.xlu0 %v659
      %v661 = vpop.xlane.xlu0 %660
      %v662 = vsub.f32 %v654, %v661
      %v663 = vmul.f32 %v662, 1.442695
      %v664 = vpow.pop %v663
      %v665 = vsel %vm451, %v664, 0.0
      %666 = vadd.xlane.f32.xlu0 %v665
      %v667 = vpop.xlane.xlu0 %666
      %v668 = vmax.f32 %v667, 1e-30
      %v669 = vrcp.pop %v668
      %v670 = vmul.f32 %v664, %v669
      %v671 = vpack.c.bf16 %v670, %v670
      %672 = vrot.lane.b32.xlu0 %v433, 56
      %v673 = vpop.permute.xlu0 %672
      %v675 = vsel %vm451, %v671, 0
      %v678 = vsel %vm516, %v673, 0
      %680 = vmatprep.subr.bf16.mxu0 0
      %681 = vmatpush1.bf16.msra.mxu0 %v678
      %682 = vmatprep.subr.bf16.mxu0 0
      %683 = vmatpush1.bf16.msra.mxu0 0
      %684 = vmatprep.subr.bf16.mxu0 0
      %685 = vmatpush1.bf16.msra.mxu0 0
      %686 = vmatprep.subr.bf16.mxu0 0
      %687 = vmatpush1.bf16.msra.mxu0 0
      %688 = vmatprep.subr.bf16.mxu0 0
      %689 = vmatpush1.bf16.msra.mxu0 0
      %690 = vmatprep.subr.bf16.mxu0 0
      %691 = vmatpush1.bf16.msra.mxu0 0
      %692 = vmatprep.subr.bf16.mxu0 0
      %693 = vmatpush1.bf16.msra.mxu0 0
      %694 = vmatprep.subr.bf16.mxu0 0
      %695 = vmatpush1.bf16.msra.mxu0 0
      %696 = vmatprep.subr.bf16.mxu0 0
      %697 = vmatpush1.bf16.msra.mxu0 0
      %698 = vmatprep.subr.bf16.mxu0 0
      %699 = vmatpush1.bf16.msra.mxu0 0
      %700 = vmatprep.subr.bf16.mxu0 0
      %701 = vmatpush1.bf16.msra.mxu0 0
      %702 = vmatprep.subr.bf16.mxu0 0
      %703 = vmatpush1.bf16.msra.mxu0 0
      %704 = vmatprep.subr.bf16.mxu0 0
      %705 = vmatpush1.bf16.msra.mxu0 0
      %706 = vmatprep.subr.bf16.mxu0 0
      %707 = vmatpush1.bf16.msra.mxu0 0
      %708 = vmatprep.subr.bf16.mxu0 0
      %709 = vmatpush1.bf16.msra.mxu0 0
      %710 = vmatprep.subr.bf16.mxu0 0
      %711 = vmatpush1.bf16.msra.mxu0 0
      %712 = vmatprep.mubr.bf16.mxu0 0
      %713 = vmatmul.mubr.bf16.gmra.mrb[0].mxu0 %v675
      %v714 = vpop.f32.mrb[0].mxu0
      %v715 = vadd.f32 0.0, %v714
      %v716 = vpop.f32.mrb[0].mxu0
      %v717 = vpop.f32.mrb[0].mxu0
      %v718 = vpop.f32.mrb[0].mxu0
      %719 = vdwg.mxu0
      %v720 = vpack.c.bf16 %v715, %v715
      %v721 = vld [vmem:[%s4 + $0x4] sm:$0xf]
      %v723 = vsel %vm451, %v720, 0
      %v726 = vsel %vm516, %v721, 0
      %728 = vmatprep.subr.bf16.mxu0 0
      %729 = vmatpush1.bf16.msra.mxu0 %v726
      %730 = vmatprep.subr.bf16.mxu0 0
      %731 = vmatpush1.bf16.msra.mxu0 0
      %732 = vmatprep.subr.bf16.mxu0 0
      %733 = vmatpush1.bf16.msra.mxu0 0
      %734 = vmatprep.subr.bf16.mxu0 0
      %735 = vmatpush1.bf16.msra.mxu0 0
      %736 = vmatprep.subr.bf16.mxu0 0
      %737 = vmatpush1.bf16.msra.mxu0 0
      %738 = vmatprep.subr.bf16.mxu0 0
      %739 = vmatpush1.bf16.msra.mxu0 0
      %740 = vmatprep.subr.bf16.mxu0 0
      %741 = vmatpush1.bf16.msra.mxu0 0
      %742 = vmatprep.subr.bf16.mxu0 0
      %743 = vmatpush1.bf16.msra.mxu0 0
      %744 = vmatprep.subr.bf16.mxu0 0
      %745 = vmatpush1.bf16.msra.mxu0 0
      %746 = vmatprep.subr.bf16.mxu0 0
      %747 = vmatpush1.bf16.msra.mxu0 0
      %748 = vmatprep.subr.bf16.mxu0 0
      %749 = vmatpush1.bf16.msra.mxu0 0
      %750 = vmatprep.subr.bf16.mxu0 0
      %751 = vmatpush1.bf16.msra.mxu0 0
      %752 = vmatprep.subr.bf16.mxu0 0
      %753 = vmatpush1.bf16.msra.mxu0 0
      %754 = vmatprep.subr.bf16.mxu0 0
      %755 = vmatpush1.bf16.msra.mxu0 0
      %756 = vmatprep.subr.bf16.mxu0 0
      %757 = vmatpush1.bf16.msra.mxu0 0
      %758 = vmatprep.subr.bf16.mxu0 0
      %759 = vmatpush1.bf16.msra.mxu0 0
      %760 = vmatprep.mubr.bf16.mxu0 0
      %761 = vmatmul.mubr.bf16.gmra.mrb[0].mxu0 %v723
      %v762 = vpop.f32.mrb[0].mxu0
      %v763 = vadd.f32 0.0, %v762
      %v764 = vpop.f32.mrb[0].mxu0
      %v765 = vpop.f32.mrb[0].mxu0
      %v766 = vpop.f32.mrb[0].mxu0
      %767 = vdwg.mxu0
      %v768 = vadd.f32 %v608, %v763
      %769 = vrot.lane.b32.xlu0 %v433, 112
      %v770 = vpop.permute.xlu0 %769
      %771 = vrot.lane.b32.xlu0 %v433, 80
      %v772 = vpop.permute.xlu0 %771
      %v774 = vsel %vm451, %v770, 0
      %v777 = vsel %vm451, %v772, 0
      %779 = vmatprep.subr.bf16.mxu0 0
      %780 = vmatpush1.bf16.xpose.msra.mxu0 %v777
      %781 = vmatprep.subr.bf16.mxu0 0
      %782 = vmatpush1.bf16.xpose.msra.mxu0 0
      %783 = vmatprep.subr.bf16.mxu0 0
      %784 = vmatpush1.bf16.xpose.msra.mxu0 0
      %785 = vmatprep.subr.bf16.mxu0 0
      %786 = vmatpush1.bf16.xpose.msra.mxu0 0
      %787 = vmatprep.subr.bf16.mxu0 0
      %788 = vmatpush1.bf16.xpose.msra.mxu0 0
      %789 = vmatprep.subr.bf16.mxu0 0
      %790 = vmatpush1.bf16.xpose.msra.mxu0 0
      %791 = vmatprep.subr.bf16.mxu0 0
      %792 = vmatpush1.bf16.xpose.msra.mxu0 0
      %793 = vmatprep.subr.bf16.mxu0 0
      %794 = vmatpush1.bf16.xpose.msra.mxu0 0
      %795 = vmatprep.subr.bf16.mxu0 0
      %796 = vmatpush1.bf16.xpose.msra.mxu0 0
      %797 = vmatprep.subr.bf16.mxu0 0
      %798 = vmatpush1.bf16.xpose.msra.mxu0 0
      %799 = vmatprep.subr.bf16.mxu0 0
      %800 = vmatpush1.bf16.xpose.msra.mxu0 0
      %801 = vmatprep.subr.bf16.mxu0 0
      %802 = vmatpush1.bf16.xpose.msra.mxu0 0
      %803 = vmatprep.subr.bf16.mxu0 0
      %804 = vmatpush1.bf16.xpose.msra.mxu0 0
      %805 = vmatprep.subr.bf16.mxu0 0
      %806 = vmatpush1.bf16.xpose.msra.mxu0 0
      %807 = vmatprep.subr.bf16.mxu0 0
      %808 = vmatpush1.bf16.xpose.msra.mxu0 0
      %809 = vmatprep.subr.bf16.mxu0 0
      %810 = vmatpush1.bf16.xpose.msra.mxu0 0
      %811 = vmatprep.mubr.bf16.mxu0 0
      %812 = vmatmul.mubr.bf16.gmra.mrb[0].mxu0 %v774
      %v813 = vpop.f32.mrb[0].mxu0
      %v814 = vadd.f32 %v438, %v813
      %v815 = vpop.f32.mrb[0].mxu0
      %v816 = vpop.f32.mrb[0].mxu0
      %v817 = vpop.f32.mrb[0].mxu0
      %818 = vdwg.mxu0
      %v819 = vsel %vm451, %v814, -inf
      %820 = vmax.xlane.f32.xlu0 %v819
      %v821 = vpop.xlane.xlu0 %820
      %v822 = vsub.f32 %v814, %v821
      %v823 = vmul.f32 %v822, 1.442695
      %v824 = vpow.pop %v823
      %v825 = vsel %vm451, %v824, 0.0
      %826 = vadd.xlane.f32.xlu0 %v825
      %v827 = vpop.xlane.xlu0 %826
      %v828 = vmax.f32 %v827, 1e-30
      %v829 = vrcp.pop %v828
      %v830 = vmul.f32 %v824, %v829
      %v831 = vpack.c.bf16 %v830, %v830
      %832 = vrot.lane.b32.xlu0 %v433, 48
      %v833 = vpop.permute.xlu0 %832
      %v835 = vsel %vm451, %v831, 0
      %v838 = vsel %vm516, %v833, 0
      %840 = vmatprep.subr.bf16.mxu0 0
      %841 = vmatpush1.bf16.msra.mxu0 %v838
      %842 = vmatprep.subr.bf16.mxu0 0
      %843 = vmatpush1.bf16.msra.mxu0 0
      %844 = vmatprep.subr.bf16.mxu0 0
      %845 = vmatpush1.bf16.msra.mxu0 0
      %846 = vmatprep.subr.bf16.mxu0 0
      %847 = vmatpush1.bf16.msra.mxu0 0
      %848 = vmatprep.subr.bf16.mxu0 0
      %849 = vmatpush1.bf16.msra.mxu0 0
      %850 = vmatprep.subr.bf16.mxu0 0
      %851 = vmatpush1.bf16.msra.mxu0 0
      %852 = vmatprep.subr.bf16.mxu0 0
      %853 = vmatpush1.bf16.msra.mxu0 0
      %854 = vmatprep.subr.bf16.mxu0 0
      %855 = vmatpush1.bf16.msra.mxu0 0
      %856 = vmatprep.subr.bf16.mxu0 0
      %857 = vmatpush1.bf16.msra.mxu0 0
      %858 = vmatprep.subr.bf16.mxu0 0
      %859 = vmatpush1.bf16.msra.mxu0 0
      %860 = vmatprep.subr.bf16.mxu0 0
      %861 = vmatpush1.bf16.msra.mxu0 0
      %862 = vmatprep.subr.bf16.mxu0 0
      %863 = vmatpush1.bf16.msra.mxu0 0
      %864 = vmatprep.subr.bf16.mxu0 0
      %865 = vmatpush1.bf16.msra.mxu0 0
      %866 = vmatprep.subr.bf16.mxu0 0
      %867 = vmatpush1.bf16.msra.mxu0 0
      %868 = vmatprep.subr.bf16.mxu0 0
      %869 = vmatpush1.bf16.msra.mxu0 0
      %870 = vmatprep.subr.bf16.mxu0 0
      %871 = vmatpush1.bf16.msra.mxu0 0
      %872 = vmatprep.mubr.bf16.mxu0 0
      %873 = vmatmul.mubr.bf16.gmra.mrb[0].mxu0 %v835
      %v874 = vpop.f32.mrb[0].mxu0
      %v875 = vadd.f32 0.0, %v874
      %v876 = vpop.f32.mrb[0].mxu0
      %v877 = vpop.f32.mrb[0].mxu0
      %v878 = vpop.f32.mrb[0].mxu0
      %879 = vdwg.mxu0
      %v880 = vpack.c.bf16 %v875, %v875
      %v881 = vld [vmem:[%s4 + $0x8] sm:$0xf]
      %v883 = vsel %vm451, %v880, 0
      %v886 = vsel %vm516, %v881, 0
      %888 = vmatprep.subr.bf16.mxu0 0
      %889 = vmatpush1.bf16.msra.mxu0 %v886
      %890 = vmatprep.subr.bf16.mxu0 0
      %891 = vmatpush1.bf16.msra.mxu0 0
      %892 = vmatprep.subr.bf16.mxu0 0
      %893 = vmatpush1.bf16.msra.mxu0 0
      %894 = vmatprep.subr.bf16.mxu0 0
      %895 = vmatpush1.bf16.msra.mxu0 0
      %896 = vmatprep.subr.bf16.mxu0 0
      %897 = vmatpush1.bf16.msra.mxu0 0
      %898 = vmatprep.subr.bf16.mxu0 0
      %899 = vmatpush1.bf16.msra.mxu0 0
      %900 = vmatprep.subr.bf16.mxu0 0
      %901 = vmatpush1.bf16.msra.mxu0 0
      %902 = vmatprep.subr.bf16.mxu0 0
      %903 = vmatpush1.bf16.msra.mxu0 0
      %904 = vmatprep.subr.bf16.mxu0 0
      %905 = vmatpush1.bf16.msra.mxu0 0
      %906 = vmatprep.subr.bf16.mxu0 0
      %907 = vmatpush1.bf16.msra.mxu0 0
      %908 = vmatprep.subr.bf16.mxu0 0
      %909 = vmatpush1.bf16.msra.mxu0 0
      %910 = vmatprep.subr.bf16.mxu0 0
      %911 = vmatpush1.bf16.msra.mxu0 0
      %912 = vmatprep.subr.bf16.mxu0 0
      %913 = vmatpush1.bf16.msra.mxu0 0
      %914 = vmatprep.subr.bf16.mxu0 0
      %915 = vmatpush1.bf16.msra.mxu0 0
      %916 = vmatprep.subr.bf16.mxu0 0
      %917 = vmatpush1.bf16.msra.mxu0 0
      %918 = vmatprep.subr.bf16.mxu0 0
      %919 = vmatpush1.bf16.msra.mxu0 0
      %920 = vmatprep.mubr.bf16.mxu0 0
      %921 = vmatmul.mubr.bf16.gmra.mrb[0].mxu0 %v883
      %v922 = vpop.f32.mrb[0].mxu0
      %v923 = vadd.f32 0.0, %v922
      %v924 = vpop.f32.mrb[0].mxu0
      %v925 = vpop.f32.mrb[0].mxu0
      %v926 = vpop.f32.mrb[0].mxu0
      %927 = vdwg.mxu0
      %v928 = vadd.f32 %v768, %v923
      %929 = vrot.lane.b32.xlu0 %v433, 104
      %v930 = vpop.permute.xlu0 %929
      %931 = vrot.lane.b32.xlu0 %v433, 72
      %v932 = vpop.permute.xlu0 %931
      %v934 = vsel %vm451, %v930, 0
      %v937 = vsel %vm451, %v932, 0
      %939 = vmatprep.subr.bf16.mxu0 0
      %940 = vmatpush1.bf16.xpose.msra.mxu0 %v937
      %941 = vmatprep.subr.bf16.mxu0 0
      %942 = vmatpush1.bf16.xpose.msra.mxu0 0
      %943 = vmatprep.subr.bf16.mxu0 0
      %944 = vmatpush1.bf16.xpose.msra.mxu0 0
      %945 = vmatprep.subr.bf16.mxu0 0
      %946 = vmatpush1.bf16.xpose.msra.mxu0 0
      %947 = vmatprep.subr.bf16.mxu0 0
      %948 = vmatpush1.bf16.xpose.msra.mxu0 0
      %949 = vmatprep.subr.bf16.mxu0 0
      %950 = vmatpush1.bf16.xpose.msra.mxu0 0
      %951 = vmatprep.subr.bf16.mxu0 0
      %952 = vmatpush1.bf16.xpose.msra.mxu0 0
      %953 = vmatprep.subr.bf16.mxu0 0
      %954 = vmatpush1.bf16.xpose.msra.mxu0 0
      %955 = vmatprep.subr.bf16.mxu0 0
      %956 = vmatpush1.bf16.xpose.msra.mxu0 0
      %957 = vmatprep.subr.bf16.mxu0 0
      %958 = vmatpush1.bf16.xpose.msra.mxu0 0
      %959 = vmatprep.subr.bf16.mxu0 0
      %960 = vmatpush1.bf16.xpose.msra.mxu0 0
      %961 = vmatprep.subr.bf16.mxu0 0
      %962 = vmatpush1.bf16.xpose.msra.mxu0 0
      %963 = vmatprep.subr.bf16.mxu0 0
      %964 = vmatpush1.bf16.xpose.msra.mxu0 0
      %965 = vmatprep.subr.bf16.mxu0 0
      %966 = vmatpush1.bf16.xpose.msra.mxu0 0
      %967 = vmatprep.subr.bf16.mxu0 0
      %968 = vmatpush1.bf16.xpose.msra.mxu0 0
      %969 = vmatprep.subr.bf16.mxu0 0
      %970 = vmatpush1.bf16.xpose.msra.mxu0 0
      %971 = vmatprep.mubr.bf16.mxu0 0
      %972 = vmatmul.mubr.bf16.gmra.mrb[0].mxu0 %v934
      %v973 = vpop.f32.mrb[0].mxu0
      %v974 = vadd.f32 %v438, %v973
      %v975 = vpop.f32.mrb[0].mxu0
      %v976 = vpop.f32.mrb[0].mxu0
      %v977 = vpop.f32.mrb[0].mxu0
      %978 = vdwg.mxu0
      %v979 = vsel %vm451, %v974, -inf
      %980 = vmax.xlane.f32.xlu0 %v979
      %v981 = vpop.xlane.xlu0 %980
      %v982 = vsub.f32 %v974, %v981
      %v983 = vmul.f32 %v982, 1.442695
      %v984 = vpow.pop %v983
      %v985 = vsel %vm451, %v984, 0.0
      %986 = vadd.xlane.f32.xlu0 %v985
      %v987 = vpop.xlane.xlu0 %986
      %v988 = vmax.f32 %v987, 1e-30
      %v989 = vrcp.pop %v988
      %v990 = vmul.f32 %v984, %v989
      %v991 = vpack.c.bf16 %v990, %v990
      %992 = vrot.lane.b32.xlu0 %v433, 40
      %v993 = vpop.permute.xlu0 %992
      %v995 = vsel %vm451, %v991, 0
      %v998 = vsel %vm516, %v993, 0
      %1000 = vmatprep.subr.bf16.mxu0 0
      %1001 = vmatpush1.bf16.msra.mxu0 %v998
      %1002 = vmatprep.subr.bf16.mxu0 0
      %1003 = vmatpush1.bf16.msra.mxu0 0
      %1004 = vmatprep.subr.bf16.mxu0 0
      %1005 = vmatpush1.bf16.msra.mxu0 0
      %1006 = vmatprep.subr.bf16.mxu0 0
      %1007 = vmatpush1.bf16.msra.mxu0 0
      %1008 = vmatprep.subr.bf16.mxu0 0
      %1009 = vmatpush1.bf16.msra.mxu0 0
      %1010 = vmatprep.subr.bf16.mxu0 0
      %1011 = vmatpush1.bf16.msra.mxu0 0
      %1012 = vmatprep.subr.bf16.mxu0 0
      %1013 = vmatpush1.bf16.msra.mxu0 0
      %1014 = vmatprep.subr.bf16.mxu0 0
      %1015 = vmatpush1.bf16.msra.mxu0 0
      %1016 = vmatprep.subr.bf16.mxu0 0
      %1017 = vmatpush1.bf16.msra.mxu0 0
      %1018 = vmatprep.subr.bf16.mxu0 0
      %1019 = vmatpush1.bf16.msra.mxu0 0
      %1020 = vmatprep.subr.bf16.mxu0 0
      %1021 = vmatpush1.bf16.msra.mxu0 0
      %1022 = vmatprep.subr.bf16.mxu0 0
      %1023 = vmatpush1.bf16.msra.mxu0 0
      %1024 = vmatprep.subr.bf16.mxu0 0
      %1025 = vmatpush1.bf16.msra.mxu0 0
      %1026 = vmatprep.subr.bf16.mxu0 0
      %1027 = vmatpush1.bf16.msra.mxu0 0
      %1028 = vmatprep.subr.bf16.mxu0 0
      %1029 = vmatpush1.bf16.msra.mxu0 0
      %1030 = vmatprep.subr.bf16.mxu0 0
      %1031 = vmatpush1.bf16.msra.mxu0 0
      %1032 = vmatprep.mubr.bf16.mxu0 0
      %1033 = vmatmul.mubr.bf16.gmra.mrb[0].mxu0 %v995
      %v1034 = vpop.f32.mrb[0].mxu0
      %v1035 = vadd.f32 0.0, %v1034
      %v1036 = vpop.f32.mrb[0].mxu0
      %v1037 = vpop.f32.mrb[0].mxu0
      %v1038 = vpop.f32.mrb[0].mxu0
      %1039 = vdwg.mxu0
      %v1040 = vpack.c.bf16 %v1035, %v1035
      %v1041 = vld [vmem:[%s4 + $0xc] sm:$0xf]
      %v1043 = vsel %vm451, %v1040, 0
      %v1046 = vsel %vm516, %v1041, 0
      %1048 = vmatprep.subr.bf16.mxu0 0
      %1049 = vmatpush1.bf16.msra.mxu0 %v1046
      %1050 = vmatprep.subr.bf16.mxu0 0
      %1051 = vmatpush1.bf16.msra.mxu0 0
      %1052 = vmatprep.subr.bf16.mxu0 0
      %1053 = vmatpush1.bf16.msra.mxu0 0
      %1054 = vmatprep.subr.bf16.mxu0 0
      %1055 = vmatpush1.bf16.msra.mxu0 0
      %1056 = vmatprep.subr.bf16.mxu0 0
      %1057 = vmatpush1.bf16.msra.mxu0 0
      %1058 = vmatprep.subr.bf16.mxu0 0
      %1059 = vmatpush1.bf16.msra.mxu0 0
      %1060 = vmatprep.subr.bf16.mxu0 0
      %1061 = vmatpush1.bf16.msra.mxu0 0
      %1062 = vmatprep.subr.bf16.mxu0 0
      %1063 = vmatpush1.bf16.msra.mxu0 0
      %1064 = vmatprep.subr.bf16.mxu0 0
      %1065 = vmatpush1.bf16.msra.mxu0 0
      %1066 = vmatprep.subr.bf16.mxu0 0
      %1067 = vmatpush1.bf16.msra.mxu0 0
      %1068 = vmatprep.subr.bf16.mxu0 0
      %1069 = vmatpush1.bf16.msra.mxu0 0
      %1070 = vmatprep.subr.bf16.mxu0 0
      %1071 = vmatpush1.bf16.msra.mxu0 0
      %1072 = vmatprep.subr.bf16.mxu0 0
      %1073 = vmatpush1.bf16.msra.mxu0 0
      %1074 = vmatprep.subr.bf16.mxu0 0
      %1075 = vmatpush1.bf16.msra.mxu0 0
      %1076 = vmatprep.subr.bf16.mxu0 0
      %1077 = vmatpush1.bf16.msra.mxu0 0
      %1078 = vmatprep.subr.bf16.mxu0 0
      %1079 = vmatpush1.bf16.msra.mxu0 0
      %1080 = vmatprep.mubr.bf16.mxu0 0
      %1081 = vmatmul.mubr.bf16.gmra.mrb[0].mxu0 %v1043
      %v1082 = vpop.f32.mrb[0].mxu0
      %v1083 = vadd.f32 0.0, %v1082
      %v1084 = vpop.f32.mrb[0].mxu0
      %v1085 = vpop.f32.mrb[0].mxu0
      %v1086 = vpop.f32.mrb[0].mxu0
      %1087 = vdwg.mxu0
      %v1088 = vadd.f32 %v928, %v1083
      %v1089 = vsel %vm389, %v1088, 0.0
      %1090 = vadd.xlane.f32.xlu0 %v1089
      %v1091 = vpop.xlane.xlu0 %1090
      %v1092 = vrcp.pop 32.0
      %v1093 = vmul.f32 %v1091, %v1092
      %v1094 = vsub.f32 %v1088, %v1093
      %v1095 = vmul.f32 %v1094, %v1094
      %v1096 = vsel %vm389, %v1095, 0.0
      %1097 = vadd.xlane.f32.xlu0 %v1096
      %v1098 = vpop.xlane.xlu0 %1097
      %v1099 = vmul.f32 %v1098, %v1092
      %v1100 = vadd.f32 %v1099, 1e-05
      %v1101 = vrsqrt.pop %v1100
      %v1102 = vmul.f32 %v1094, %v1101
      %v1103 = vlaneseq
      %v1104 = vshrl.u32 %v1103, 7
      %v1105 = vsub.s32 0, %v1104
      %v1106 = vrot.slane %v439, %v1105
      %v1107 = vmul.f32 %v1102, %v1106
      %v1108 = vlaneseq
      %v1109 = vshrl.u32 %v1108, 7
      %v1110 = vsub.s32 1, %v1109
      %v1111 = vrot.slane %v439, %v1110
      %v1112 = vadd.f32 %v1107, %v1111
      %v1113 = vpack.c.bf16 %v1112, %v1112
      %v1114 = vld [vmem:[%s6] sm:$0xf]
      %v1115 = vld [vmem:[%s6 + $0x4] sm:$0xf]
      %v1116 = vld [vmem:[%s6 + $0x8] sm:$0xf]
      %v1117 = vld [vmem:[%s6 + $0xc] sm:$0xf]
      %v1118 = vld [vmem:[%s7] sm:$0x1]
      %v1120 = vlaneseq
      %v1121 = vshrl.u32 %v1120, 7
      %v1122 = vsub.s32 0, %v1121
      %v1123 = vrot.slane %v1118, %v1122
      %v1129 = vunpack.c.l.b16 %v1114
      %v1130 = vunpack.c.l.b16 %v1115
      %v1131 = vunpack.c.l.b16 %v1116
      %v1132 = vunpack.c.l.b16 %v1117
      %v1133 = vpack.c.b16 %v1130, %v1129
      %v1134 = vpack.c.b16 %v1132, %v1131
      %v1138 = vsel %vm389, %v1113, 0
      %1140 = vmatprep.subr.bf16.mxu0 0
      %1141 = vmatpush1.bf16.msra.mxu0 %v1133
      %1142 = vmatprep.subr.bf16.mxu0 0
      %1143 = vmatpush1.bf16.msra.mxu0 %v1134
      %1144 = vmatprep.subr.bf16.mxu0 0
      %1145 = vmatpush1.bf16.msra.mxu0 0
      %1146 = vmatprep.subr.bf16.mxu0 0
      %1147 = vmatpush1.bf16.msra.mxu0 0
      %1148 = vmatprep.subr.bf16.mxu0 0
      %1149 = vmatpush1.bf16.msra.mxu0 0
      %1150 = vmatprep.subr.bf16.mxu0 0
      %1151 = vmatpush1.bf16.msra.mxu0 0
      %1152 = vmatprep.subr.bf16.mxu0 0
      %1153 = vmatpush1.bf16.msra.mxu0 0
      %1154 = vmatprep.subr.bf16.mxu0 0
      %1155 = vmatpush1.bf16.msra.mxu0 0
      %1156 = vmatprep.subr.bf16.mxu0 0
      %1157 = vmatpush1.bf16.msra.mxu0 0
      %1158 = vmatprep.subr.bf16.mxu0 0
      %1159 = vmatpush1.bf16.msra.mxu0 0
      %1160 = vmatprep.subr.bf16.mxu0 0
      %1161 = vmatpush1.bf16.msra.mxu0 0
      %1162 = vmatprep.subr.bf16.mxu0 0
      %1163 = vmatpush1.bf16.msra.mxu0 0
      %1164 = vmatprep.subr.bf16.mxu0 0
      %1165 = vmatpush1.bf16.msra.mxu0 0
      %1166 = vmatprep.subr.bf16.mxu0 0
      %1167 = vmatpush1.bf16.msra.mxu0 0
      %1168 = vmatprep.subr.bf16.mxu0 0
      %1169 = vmatpush1.bf16.msra.mxu0 0
      %1170 = vmatprep.subr.bf16.mxu0 0
      %1171 = vmatpush1.bf16.msra.mxu0 0
      %1172 = vmatprep.mubr.bf16.mxu0 0
      %1173 = vmatmul.mubr.bf16.gmra.mrb[0].mxu0 %v1138
      %v1174 = vpop.f32.mrb[0].mxu0
      %v1175 = vadd.f32 %v1123, %v1174
      %v1176 = vpop.f32.mrb[0].mxu0
      %v1177 = vpop.f32.mrb[0].mxu0
      %v1178 = vpop.f32.mrb[0].mxu0
      %1179 = vdwg.mxu0
      %v1180 = vmax.f32 %v1175, 0.0
      %v1181 = vpack.c.bf16 %v1180, %v1180
      %v1182 = vld [vmem:[%s8] sm:$0xf]
      %v1183 = vld [vmem:[%s8 + $0x4] sm:$0xf]
      %v1184 = vld [vmem:[%s8 + $0x8] sm:$0xf]
      %v1185 = vld [vmem:[%s8 + $0xc] sm:$0xf]
      %v1186 = vld [vmem:[%s8 + $0x10] sm:$0xf]
      %v1187 = vld [vmem:[%s8 + $0x14] sm:$0xf]
      %v1188 = vld [vmem:[%s8 + $0x18] sm:$0xf]
      %v1189 = vld [vmem:[%s8 + $0x1c] sm:$0xf]
      %v1190 = vld [vmem:[%s9] sm:$0x1]
      %v1192 = vlaneseq
      %v1193 = vshrl.u32 %v1192, 7
      %v1194 = vsub.s32 0, %v1193
      %v1195 = vrot.slane %v1190, %v1194
      %v1205 = vunpack.c.l.b16 %v1182
      %v1206 = vunpack.c.l.b16 %v1183
      %v1207 = vunpack.c.l.b16 %v1184
      %v1208 = vunpack.c.l.b16 %v1185
      %v1209 = vunpack.c.l.b16 %v1186
      %v1210 = vunpack.c.l.b16 %v1187
      %v1211 = vunpack.c.l.b16 %v1188
      %v1212 = vunpack.c.l.b16 %v1189
      %v1213 = vpack.c.b16 %v1206, %v1205
      %v1214 = vpack.c.b16 %v1208, %v1207
      %v1215 = vpack.c.b16 %v1210, %v1209
      %v1216 = vpack.c.b16 %v1212, %v1211
      %vm1221 = vcmask 523264
      %v1223 = vsel %vm1221, %v1181, 0
      %1225 = vmatprep.subr.bf16.mxu0 0
      %1226 = vmatpush1.bf16.msra.mxu0 %v1213
      %1227 = vmatprep.subr.bf16.mxu0 0
      %1228 = vmatpush1.bf16.msra.mxu0 %v1214
      %1229 = vmatprep.subr.bf16.mxu0 0
      %1230 = vmatpush1.bf16.msra.mxu0 %v1215
      %1231 = vmatprep.subr.bf16.mxu0 0
      %1232 = vmatpush1.bf16.msra.mxu0 %v1216
      %1233 = vmatprep.subr.bf16.mxu0 0
      %1234 = vmatpush1.bf16.msra.mxu0 0
      %1235 = vmatprep.subr.bf16.mxu0 0
      %1236 = vmatpush1.bf16.msra.mxu0 0
      %1237 = vmatprep.subr.bf16.mxu0 0
      %1238 = vmatpush1.bf16.msra.mxu0 0
      %1239 = vmatprep.subr.bf16.mxu0 0
      %1240 = vmatpush1.bf16.msra.mxu0 0
      %1241 = vmatprep.subr.bf16.mxu0 0
      %1242 = vmatpush1.bf16.msra.mxu0 0
      %1243 = vmatprep.subr.bf16.mxu0 0
      %1244 = vmatpush1.bf16.msra.mxu0 0
      %1245 = vmatprep.subr.bf16.mxu0 0
      %1246 = vmatpush1.bf16.msra.mxu0 0
      %1247 = vmatprep.subr.bf16.mxu0 0
      %1248 = vmatpush1.bf16.msra.mxu0 0
      %1249 = vmatprep.subr.bf16.mxu0 0
      %1250 = vmatpush1.bf16.msra.mxu0 0
      %1251 = vmatprep.subr.bf16.mxu0 0
      %1252 = vmatpush1.bf16.msra.mxu0 0
      %1253 = vmatprep.subr.bf16.mxu0 0
      %1254 = vmatpush1.bf16.msra.mxu0 0
      %1255 = vmatprep.subr.bf16.mxu0 0
      %1256 = vmatpush1.bf16.msra.mxu0 0
      %1257 = vmatprep.mubr.bf16.mxu0 0
      %1258 = vmatmul.mubr.bf16.gmra.mrb[0].mxu0 %v1223
      %v1259 = vpop.f32.mrb[0].mxu0
      %v1260 = vadd.f32 %v1195, %v1259
      %v1261 = vpop.f32.mrb[0].mxu0
      %v1262 = vpop.f32.mrb[0].mxu0
      %v1263 = vpop.f32.mrb[0].mxu0
      %1264 = vdwg.mxu0
      %v1265 = vadd.f32 %v1260, %v1112
      %v1266 = vsel %vm389, %v1265, 0.0
      %1267 = vadd.xlane.f32.xlu0 %v1266
      %v1268 = vpop.xlane.xlu0 %1267
      %v1269 = vmul.f32 %v1268, %v1092
      %v1270 = vsub.f32 %v1265, %v1269
      %v1271 = vmul.f32 %v1270, %v1270
      %v1272 = vsel %vm389, %v1271, 0.0
      %1273 = vadd.xlane.f32.xlu0 %v1272
      %v1274 = vpop.xlane.xlu0 %1273
      %v1275 = vmul.f32 %v1274, %v1092
      %v1276 = vadd.f32 %v1275, 1e-05
      %v1277 = vrsqrt.pop %v1276
      %v1278 = vmul.f32 %v1270, %v1277
      %v1279 = vlaneseq
      %v1280 = vshrl.u32 %v1279, 7
      %v1281 = vsub.s32 2, %v1280
      %v1282 = vrot.slane %v439, %v1281
      %v1283 = vmul.f32 %v1278, %v1282
      %v1284 = vlaneseq
      %v1285 = vshrl.u32 %v1284, 7
      %v1286 = vsub.s32 3, %v1285
      %v1287 = vrot.slane %v439, %v1286
      %v1288 = vadd.f32 %v1283, %v1287
      %v1289 = vpack.c.bf16 %v1288, %v1288
      %vm1290 = vcmask 257024
      %1291 = vst.msk [vmem:[%s361] sm:$0xf] %vm1290, %v1289
      %p1292 = scmp.lt.s32.totalorder %s28, 1
      %s1293 = scalar_select %p1292, %s28, 1
      %s1294 = smul.addr %s1293, 4
      %s1295 = scalar_lea.vmem %s11, %s1294
      // Predicated region
      $region61: #{bert_model_forward.2} parent=59 // pred_check
        %p1296 = pneg %p261
      $region62: #{bert_model_forward.2} parent=59 // pred_check_branch
        %1298 = sbr.rel (%p1296) target = $region64
      $region63: #{bert_model_forward.2} parent=59 // pred_region
        _
      $region64: #{bert_model_forward.2} parent=59 // pred_fallthru
        _
    $region60: #{bert_model_forward.2} parent=5 // pred_fallthru
      _
    %p1299 = scmp.le.s32.totalorder 2, %s23
    // Predicated region
    $region65: #{bert_model_forward.2} parent=5 // pred_check
      %p1300 = pneg %p1299
    $region66: #{bert_model_forward.2} parent=5 // pred_check_branch
      %1302 = sbr.rel (%p1300) target = $region68
    $region67: #{bert_model_forward.2} parent=5 // pred_region
      %s1303 = ssub.s32 %s23, 2
      // Predicated region
      $region69: #{bert_model_forward.2} parent=67 // pred_check
        %p1304 = pneg %p267
      $region70: #{bert_model_forward.2} parent=67 // pred_check_branch
        %1306 = sbr.rel (%p1304) target = $region72
      $region71: #{bert_model_forward.2} parent=67 // pred_region
        %p1307 = scmp.lt.s32.totalorder %s29, 1
        %s1308 = scalar_select %p1307, %s29, 1
        %s1309 = smul.addr %s1308, 4
        %s1310 = scalar_lea.vmem %s11, %s1309
      $region72: #{bert_model_forward.2} parent=67 // pred_fallthru
        _
    $region68: #{bert_model_forward.2} parent=5 // pred_fallthru
      _
  $region6: #{bert_model_forward.2} parent=0 // loop_footer
    %s27 = sadd.s32 1, %s23
  $region7: #{bert_model_forward.2} parent=0 // loop_footer_branch
    %22 = sbr.rel target = $region3
  $region8: #{bert_model_forward.2} parent=0 // loop_exit
    _

</llo_original>
